<compile_context>
chip_gen: v7x
topology: tpu7x:2x2x1
jax: 0.10.0
libtpu: 0.0.40
codegen_flags: <defaults>
</compile_context>

<pallas_src>
import functools

import jax
import jax.numpy as jnp
from jax.experimental import pallas as pl
from jax.experimental.pallas import tpu as pltpu

NL = 2        # number of hidden layers
NN = 32       # hidden width
F_IN = 4      # input features
F_OUT = 4     # output features
LANE = 128    # TPU lane width -> all feature dims padded to this
BATCH = 512   # test batch: 2 grid steps of 256 rows


def _round_up(x, m):
    return (x + m - 1) // m * m


def mlp_kernel(x_ref, w_in_ref, b_in_ref, w_hid_ref, b_hid_ref,
               w_out_ref, b_out_ref, out_ref, *, nsub):
    tb = x_ref.shape[0]
    sb = tb // nsub
    nl = w_hid_ref.shape[0]

    w_in = w_in_ref[...]                                     # bf16 (128, 128)
    w_out = w_out_ref[...]                                   # bf16 (128, 128)
    # Hoisted bias broadcasts (JAX does not CSE broadcast_in_dim).
    b_in = jnp.broadcast_to(b_in_ref[...], (sb, LANE))       # f32
    b_out = jnp.broadcast_to(b_out_ref[...], (sb, LANE))     # f32

    # Input layer + tanh on `nsub` independent batch sub-tiles.
    acts = []
    for s in range(nsub):
        xs = x_ref[pl.ds(s * sb, sb), :]                     # bf16 (sb, 128)
        acts.append(jnp.tanh(
            jnp.dot(xs, w_in, preferred_element_type=jnp.float32) + b_in))

    # Hidden layers + tanh (static unroll; nl is a trace-time constant).
    for i in range(nl):
        w_i = w_hid_ref[i]                                   # bf16 (128, 128)
        b_i = jnp.broadcast_to(b_hid_ref[i], (sb, LANE))     # f32
        acts = [jnp.tanh(
            jnp.dot(a.astype(w_i.dtype), w_i,
                    preferred_element_type=jnp.float32) + b_i)
            for a in acts]

    # Output layer (no activation); lane-dense (sb, 128) unmasked stores.
    for s in range(nsub):
        y = jnp.dot(acts[s].astype(w_out.dtype), w_out,
                    preferred_element_type=jnp.float32) + b_out
        out_ref[pl.ds(s * sb, sb), :] = y.astype(out_ref.dtype)


def net_forward(x, params, *, tb=256):
    """x: (B, 4) float32 -> (B, 4) float32.  Matches torch Net.forward."""
    w_in, b_in, w_hid, b_hid, w_out, b_out = params
    nl, nn = w_hid.shape[0], w_in.shape[1]
    B = x.shape[0]

    TB = min(tb, _round_up(B, 8))
    B_pad = _round_up(B, TB)
    nsub = 4 if TB % 32 == 0 else (2 if TB % 16 == 0 else 1)

    # --- zero-pad to lane-dense (..., 128) shapes; weights to bf16 ----------
    bf16 = jnp.bfloat16
    x_p = jnp.zeros((B_pad, LANE), bf16).at[:B, :F_IN].set(x.astype(bf16))
    w_in_p = jnp.zeros((LANE, LANE), jnp.float32).at[:F_IN, :nn].set(w_in).astype(bf16)
    b_in_p = jnp.zeros((1, LANE), jnp.float32).at[:, :nn].set(b_in)
    w_hid_p = jnp.zeros((nl, LANE, LANE), jnp.float32).at[:, :nn, :nn].set(w_hid).astype(bf16)
    b_hid_p = jnp.zeros((nl, 1, LANE), jnp.float32).at[:, :, :nn].set(b_hid)
    w_out_p = jnp.zeros((LANE, LANE), jnp.float32).at[:nn, :F_OUT].set(w_out).astype(bf16)
    b_out_p = jnp.zeros((1, LANE), jnp.float32).at[:, :F_OUT].set(b_out)

    const2 = lambda i: (0, 0)
    const3 = lambda i: (0, 0, 0)
    out_p = pl.pallas_call(
        functools.partial(mlp_kernel, nsub=nsub),
        out_shape=jax.ShapeDtypeStruct((B_pad, LANE), jnp.float32),
        grid=(B_pad // TB,),
        in_specs=[
            pl.BlockSpec((TB, LANE), lambda i: (i, 0)),       # x batch tile
            pl.BlockSpec((LANE, LANE), const2),               # w_in   (resident)
            pl.BlockSpec((1, LANE), const2),                  # b_in   (resident)
            pl.BlockSpec((nl, LANE, LANE), const3),           # w_hid  (resident)
            pl.BlockSpec((nl, 1, LANE), const3),              # b_hid  (resident)
            pl.BlockSpec((LANE, LANE), const2),               # w_out  (resident)
            pl.BlockSpec((1, LANE), const2),                  # b_out  (resident)
        ],
        out_specs=pl.BlockSpec((TB, LANE), lambda i: (i, 0)),
        compiler_params=pltpu.CompilerParams(
            dimension_semantics=("parallel",)),
    )(x_p, w_in_p, b_in_p, w_hid_p, b_hid_p, w_out_p, b_out_p)

    return out_p[:B, :F_OUT]


def init_params(key, nl=NL, nn=NN):
    """Deterministic synthetic parameters (shapes mirror the nn.Linear layers,
    stored as [in_features, out_features] so y = x @ W + b)."""
    ks = jax.random.split(key, 6)
    scale = 0.1
    w_in = scale * jax.random.normal(ks[0], (F_IN, nn), jnp.float32)
    b_in = scale * jax.random.normal(ks[1], (1, nn), jnp.float32)
    w_hid = scale * jax.random.normal(ks[2], (nl, nn, nn), jnp.float32)
    b_hid = scale * jax.random.normal(ks[3], (nl, 1, nn), jnp.float32)
    w_out = scale * jax.random.normal(ks[4], (nn, F_OUT), jnp.float32)
    b_out = scale * jax.random.normal(ks[5], (1, F_OUT), jnp.float32)
    return (w_in, b_in, w_hid, b_hid, w_out, b_out)


def net_forward_ref(x, params):
    """Pure-JAX f32 reference of the same forward pass."""
    w_in, b_in, w_hid, b_hid, w_out, b_out = params
    o = jnp.tanh(x @ w_in + b_in)
    for i in range(w_hid.shape[0]):
        o = jnp.tanh(o @ w_hid[i] + b_hid[i])
    return o @ w_out + b_out


if __name__ == "__main__":
    key = jax.random.PRNGKey(0)
    kx, kp = jax.random.split(key)
    x = jax.random.normal(kx, (BATCH, F_IN), jnp.float32)
    params = init_params(kp)

    out = jax.jit(net_forward)(x, params)
    out = jax.block_until_ready(out)

    ref = net_forward_ref(x, params)
    assert out.shape == (BATCH, F_OUT)
    # Matmul operands are bf16 (f32 accumulate / f32 tanh) -> loosened tolerance.
    assert jnp.allclose(out, ref, atol=2e-2, rtol=2e-2), "mismatch vs reference"

    print("KERNEL_OK")
</pallas_src>

<mosaic_0001>
module attributes {stable_mosaic.version = 11 : i64} {
  func.func @mlp_kernel(%arg0: i32, %arg1: memref<256x128xbf16, #tpu.memory_space<vmem>>, %arg2: memref<128x128xbf16, #tpu.memory_space<vmem>>, %arg3: memref<1x128xf32, #tpu.memory_space<vmem>>, %arg4: memref<2x128x128xbf16, #tpu.memory_space<vmem>>, %arg5: memref<2x1x128xf32, #tpu.memory_space<vmem>>, %arg6: memref<128x128xbf16, #tpu.memory_space<vmem>>, %arg7: memref<1x128xf32, #tpu.memory_space<vmem>>, %arg8: memref<256x128xf32, #tpu.memory_space<vmem>>) attributes {dimension_semantics = [#tpu.dimension_semantics<parallel>], iteration_bounds = array<i64: 2>, scalar_prefetch = 0 : i64, scratch_operands = 0 : i64, tpu.core_type = #tpu.core_type<tc>, window_params = [{transform_indices = @transform_0, window_bounds = array<i64: 256, 128>}, {pipeline_mode = #tpu.pipeline_mode<synchronous>, transform_indices = @transform_1, window_bounds = array<i64: 128, 128>}, {pipeline_mode = #tpu.pipeline_mode<synchronous>, transform_indices = @transform_2, window_bounds = array<i64: 1, 128>}, {pipeline_mode = #tpu.pipeline_mode<synchronous>, transform_indices = @transform_3, window_bounds = array<i64: 2, 128, 128>}, {pipeline_mode = #tpu.pipeline_mode<synchronous>, transform_indices = @transform_4, window_bounds = array<i64: 2, 1, 128>}, {pipeline_mode = #tpu.pipeline_mode<synchronous>, transform_indices = @transform_5, window_bounds = array<i64: 128, 128>}, {pipeline_mode = #tpu.pipeline_mode<synchronous>, transform_indices = @transform_6, window_bounds = array<i64: 1, 128>}, {transform_indices = @transform_7, window_bounds = array<i64: 256, 128>}]} {
    %c0 = arith.constant 0 : index
    %c0_0 = arith.constant 0 : index
    %0 = vector.load %arg2[%c0, %c0_0] : memref<128x128xbf16, #tpu.memory_space<vmem>>, vector<128x128xbf16>
    %c0_1 = arith.constant 0 : index
    %c0_2 = arith.constant 0 : index
    %1 = vector.load %arg6[%c0_1, %c0_2] : memref<128x128xbf16, #tpu.memory_space<vmem>>, vector<128x128xbf16>
    %c0_3 = arith.constant 0 : index
    %c0_4 = arith.constant 0 : index
    %2 = vector.load %arg3[%c0_3, %c0_4] : memref<1x128xf32, #tpu.memory_space<vmem>>, vector<1x128xf32>
    %3 = vector.shape_cast %2 : vector<1x128xf32> to vector<1x128xf32>
    %4 = vector.broadcast %3 : vector<1x128xf32> to vector<64x128xf32>
    %c0_5 = arith.constant 0 : index
    %c0_6 = arith.constant 0 : index
    %5 = vector.load %arg7[%c0_5, %c0_6] : memref<1x128xf32, #tpu.memory_space<vmem>>, vector<1x128xf32>
    %6 = vector.shape_cast %5 : vector<1x128xf32> to vector<1x128xf32>
    %7 = vector.broadcast %6 : vector<1x128xf32> to vector<64x128xf32>
    %c0_7 = arith.constant 0 : index
    %c0_8 = arith.constant 0 : index
    %8 = vector.load %arg1[%c0_7, %c0_8] : memref<256x128xbf16, #tpu.memory_space<vmem>>, vector<64x128xbf16>
    %cst = arith.constant dense<0.000000e+00> : vector<64x128xf32>
    %9 = tpu.matmul %8, %0, %cst {dimension_numbers = #tpu.dot_dimension_numbers<[1], [0], [0], [1], [0, 0, 1, 1], [], []>} : vector<64x128xbf16>, vector<128x128xbf16>, vector<64x128xf32> -> vector<64x128xf32>
    %10 = arith.addf %9, %4 : vector<64x128xf32>
    %11 = math.tanh %10 : vector<64x128xf32>
    %c64 = arith.constant 64 : index
    %c0_9 = arith.constant 0 : index
    %12 = vector.load %arg1[%c64, %c0_9] : memref<256x128xbf16, #tpu.memory_space<vmem>>, vector<64x128xbf16>
    %cst_10 = arith.constant dense<0.000000e+00> : vector<64x128xf32>
    %13 = tpu.matmul %12, %0, %cst_10 {dimension_numbers = #tpu.dot_dimension_numbers<[1], [0], [0], [1], [0, 0, 1, 1], [], []>} : vector<64x128xbf16>, vector<128x128xbf16>, vector<64x128xf32> -> vector<64x128xf32>
    %14 = arith.addf %13, %4 : vector<64x128xf32>
    %15 = math.tanh %14 : vector<64x128xf32>
    %c128 = arith.constant 128 : index
    %c0_11 = arith.constant 0 : index
    %16 = vector.load %arg1[%c128, %c0_11] : memref<256x128xbf16, #tpu.memory_space<vmem>>, vector<64x128xbf16>
    %cst_12 = arith.constant dense<0.000000e+00> : vector<64x128xf32>
    %17 = tpu.matmul %16, %0, %cst_12 {dimension_numbers = #tpu.dot_dimension_numbers<[1], [0], [0], [1], [0, 0, 1, 1], [], []>} : vector<64x128xbf16>, vector<128x128xbf16>, vector<64x128xf32> -> vector<64x128xf32>
    %18 = arith.addf %17, %4 : vector<64x128xf32>
    %19 = math.tanh %18 : vector<64x128xf32>
    %c192 = arith.constant 192 : index
    %c0_13 = arith.constant 0 : index
    %20 = vector.load %arg1[%c192, %c0_13] : memref<256x128xbf16, #tpu.memory_space<vmem>>, vector<64x128xbf16>
    %cst_14 = arith.constant dense<0.000000e+00> : vector<64x128xf32>
    %21 = tpu.matmul %20, %0, %cst_14 {dimension_numbers = #tpu.dot_dimension_numbers<[1], [0], [0], [1], [0, 0, 1, 1], [], []>} : vector<64x128xbf16>, vector<128x128xbf16>, vector<64x128xf32> -> vector<64x128xf32>
    %22 = arith.addf %21, %4 : vector<64x128xf32>
    %23 = math.tanh %22 : vector<64x128xf32>
    %c0_15 = arith.constant 0 : index
    %c0_16 = arith.constant 0 : index
    %c0_17 = arith.constant 0 : index
    %24 = vector.load %arg4[%c0_15, %c0_16, %c0_17] : memref<2x128x128xbf16, #tpu.memory_space<vmem>>, vector<1x128x128xbf16>
    %25 = vector.shape_cast %24 : vector<1x128x128xbf16> to vector<128x128xbf16>
    %c0_18 = arith.constant 0 : index
    %c0_19 = arith.constant 0 : index
    %c0_20 = arith.constant 0 : index
    %26 = vector.load %arg5[%c0_18, %c0_19, %c0_20] : memref<2x1x128xf32, #tpu.memory_space<vmem>>, vector<1x1x128xf32>
    %27 = vector.shape_cast %26 : vector<1x1x128xf32> to vector<1x128xf32>
    %28 = vector.shape_cast %27 : vector<1x128xf32> to vector<1x128xf32>
    %29 = vector.broadcast %28 : vector<1x128xf32> to vector<64x128xf32>
    %30 = arith.truncf %11 : vector<64x128xf32> to vector<64x128xbf16>
    %cst_21 = arith.constant dense<0.000000e+00> : vector<64x128xf32>
    %31 = tpu.matmul %30, %25, %cst_21 {dimension_numbers = #tpu.dot_dimension_numbers<[1], [0], [0], [1], [0, 0, 1, 1], [], []>} : vector<64x128xbf16>, vector<128x128xbf16>, vector<64x128xf32> -> vector<64x128xf32>
    %32 = arith.addf %31, %29 : vector<64x128xf32>
    %33 = math.tanh %32 : vector<64x128xf32>
    %34 = arith.truncf %15 : vector<64x128xf32> to vector<64x128xbf16>
    %cst_22 = arith.constant dense<0.000000e+00> : vector<64x128xf32>
    %35 = tpu.matmul %34, %25, %cst_22 {dimension_numbers = #tpu.dot_dimension_numbers<[1], [0], [0], [1], [0, 0, 1, 1], [], []>} : vector<64x128xbf16>, vector<128x128xbf16>, vector<64x128xf32> -> vector<64x128xf32>
    %36 = arith.addf %35, %29 : vector<64x128xf32>
    %37 = math.tanh %36 : vector<64x128xf32>
    %38 = arith.truncf %19 : vector<64x128xf32> to vector<64x128xbf16>
    %cst_23 = arith.constant dense<0.000000e+00> : vector<64x128xf32>
    %39 = tpu.matmul %38, %25, %cst_23 {dimension_numbers = #tpu.dot_dimension_numbers<[1], [0], [0], [1], [0, 0, 1, 1], [], []>} : vector<64x128xbf16>, vector<128x128xbf16>, vector<64x128xf32> -> vector<64x128xf32>
    %40 = arith.addf %39, %29 : vector<64x128xf32>
    %41 = math.tanh %40 : vector<64x128xf32>
    %42 = arith.truncf %23 : vector<64x128xf32> to vector<64x128xbf16>
    %cst_24 = arith.constant dense<0.000000e+00> : vector<64x128xf32>
    %43 = tpu.matmul %42, %25, %cst_24 {dimension_numbers = #tpu.dot_dimension_numbers<[1], [0], [0], [1], [0, 0, 1, 1], [], []>} : vector<64x128xbf16>, vector<128x128xbf16>, vector<64x128xf32> -> vector<64x128xf32>
    %44 = arith.addf %43, %29 : vector<64x128xf32>
    %45 = math.tanh %44 : vector<64x128xf32>
    %c1 = arith.constant 1 : index
    %c0_25 = arith.constant 0 : index
    %c0_26 = arith.constant 0 : index
    %46 = vector.load %arg4[%c1, %c0_25, %c0_26] : memref<2x128x128xbf16, #tpu.memory_space<vmem>>, vector<1x128x128xbf16>
    %47 = vector.shape_cast %46 : vector<1x128x128xbf16> to vector<128x128xbf16>
    %c1_27 = arith.constant 1 : index
    %c0_28 = arith.constant 0 : index
    %c0_29 = arith.constant 0 : index
    %48 = vector.load %arg5[%c1_27, %c0_28, %c0_29] : memref<2x1x128xf32, #tpu.memory_space<vmem>>, vector<1x1x128xf32>
    %49 = vector.shape_cast %48 : vector<1x1x128xf32> to vector<1x128xf32>
    %50 = vector.shape_cast %49 : vector<1x128xf32> to vector<1x128xf32>
    %51 = vector.broadcast %50 : vector<1x128xf32> to vector<64x128xf32>
    %52 = arith.truncf %33 : vector<64x128xf32> to vector<64x128xbf16>
    %cst_30 = arith.constant dense<0.000000e+00> : vector<64x128xf32>
    %53 = tpu.matmul %52, %47, %cst_30 {dimension_numbers = #tpu.dot_dimension_numbers<[1], [0], [0], [1], [0, 0, 1, 1], [], []>} : vector<64x128xbf16>, vector<128x128xbf16>, vector<64x128xf32> -> vector<64x128xf32>
    %54 = arith.addf %53, %51 : vector<64x128xf32>
    %55 = math.tanh %54 : vector<64x128xf32>
    %56 = arith.truncf %37 : vector<64x128xf32> to vector<64x128xbf16>
    %cst_31 = arith.constant dense<0.000000e+00> : vector<64x128xf32>
    %57 = tpu.matmul %56, %47, %cst_31 {dimension_numbers = #tpu.dot_dimension_numbers<[1], [0], [0], [1], [0, 0, 1, 1], [], []>} : vector<64x128xbf16>, vector<128x128xbf16>, vector<64x128xf32> -> vector<64x128xf32>
    %58 = arith.addf %57, %51 : vector<64x128xf32>
    %59 = math.tanh %58 : vector<64x128xf32>
    %60 = arith.truncf %41 : vector<64x128xf32> to vector<64x128xbf16>
    %cst_32 = arith.constant dense<0.000000e+00> : vector<64x128xf32>
    %61 = tpu.matmul %60, %47, %cst_32 {dimension_numbers = #tpu.dot_dimension_numbers<[1], [0], [0], [1], [0, 0, 1, 1], [], []>} : vector<64x128xbf16>, vector<128x128xbf16>, vector<64x128xf32> -> vector<64x128xf32>
    %62 = arith.addf %61, %51 : vector<64x128xf32>
    %63 = math.tanh %62 : vector<64x128xf32>
    %64 = arith.truncf %45 : vector<64x128xf32> to vector<64x128xbf16>
    %cst_33 = arith.constant dense<0.000000e+00> : vector<64x128xf32>
    %65 = tpu.matmul %64, %47, %cst_33 {dimension_numbers = #tpu.dot_dimension_numbers<[1], [0], [0], [1], [0, 0, 1, 1], [], []>} : vector<64x128xbf16>, vector<128x128xbf16>, vector<64x128xf32> -> vector<64x128xf32>
    %66 = arith.addf %65, %51 : vector<64x128xf32>
    %67 = math.tanh %66 : vector<64x128xf32>
    %68 = arith.truncf %55 : vector<64x128xf32> to vector<64x128xbf16>
    %cst_34 = arith.constant dense<0.000000e+00> : vector<64x128xf32>
    %69 = tpu.matmul %68, %1, %cst_34 {dimension_numbers = #tpu.dot_dimension_numbers<[1], [0], [0], [1], [0, 0, 1, 1], [], []>} : vector<64x128xbf16>, vector<128x128xbf16>, vector<64x128xf32> -> vector<64x128xf32>
    %70 = arith.addf %69, %7 : vector<64x128xf32>
    %c0_35 = arith.constant 0 : index
    %c0_36 = arith.constant 0 : index
    %71 = vector.load %arg8[%c0_35, %c0_36] : memref<256x128xf32, #tpu.memory_space<vmem>>, vector<64x128xf32>
    tpu.vector_store %arg8[%c0_35, %c0_36], %70 {strides = array<i32>} : memref<256x128xf32, #tpu.memory_space<vmem>>, vector<64x128xf32>,
    %72 = arith.truncf %59 : vector<64x128xf32> to vector<64x128xbf16>
    %cst_37 = arith.constant dense<0.000000e+00> : vector<64x128xf32>
    %73 = tpu.matmul %72, %1, %cst_37 {dimension_numbers = #tpu.dot_dimension_numbers<[1], [0], [0], [1], [0, 0, 1, 1], [], []>} : vector<64x128xbf16>, vector<128x128xbf16>, vector<64x128xf32> -> vector<64x128xf32>
    %74 = arith.addf %73, %7 : vector<64x128xf32>
    %c64_38 = arith.constant 64 : index
    %c0_39 = arith.constant 0 : index
    %75 = vector.load %arg8[%c64_38, %c0_39] : memref<256x128xf32, #tpu.memory_space<vmem>>, vector<64x128xf32>
    tpu.vector_store %arg8[%c64_38, %c0_39], %74 {strides = array<i32>} : memref<256x128xf32, #tpu.memory_space<vmem>>, vector<64x128xf32>,
    %76 = arith.truncf %63 : vector<64x128xf32> to vector<64x128xbf16>
    %cst_40 = arith.constant dense<0.000000e+00> : vector<64x128xf32>
    %77 = tpu.matmul %76, %1, %cst_40 {dimension_numbers = #tpu.dot_dimension_numbers<[1], [0], [0], [1], [0, 0, 1, 1], [], []>} : vector<64x128xbf16>, vector<128x128xbf16>, vector<64x128xf32> -> vector<64x128xf32>
    %78 = arith.addf %77, %7 : vector<64x128xf32>
    %c128_41 = arith.constant 128 : index
    %c0_42 = arith.constant 0 : index
    %79 = vector.load %arg8[%c128_41, %c0_42] : memref<256x128xf32, #tpu.memory_space<vmem>>, vector<64x128xf32>
    tpu.vector_store %arg8[%c128_41, %c0_42], %78 {strides = array<i32>} : memref<256x128xf32, #tpu.memory_space<vmem>>, vector<64x128xf32>,
    %80 = arith.truncf %67 : vector<64x128xf32> to vector<64x128xbf16>
    %cst_43 = arith.constant dense<0.000000e+00> : vector<64x128xf32>
    %81 = tpu.matmul %80, %1, %cst_43 {dimension_numbers = #tpu.dot_dimension_numbers<[1], [0], [0], [1], [0, 0, 1, 1], [], []>} : vector<64x128xbf16>, vector<128x128xbf16>, vector<64x128xf32> -> vector<64x128xf32>
    %82 = arith.addf %81, %7 : vector<64x128xf32>
    %c192_44 = arith.constant 192 : index
    %c0_45 = arith.constant 0 : index
    %83 = vector.load %arg8[%c192_44, %c0_45] : memref<256x128xf32, #tpu.memory_space<vmem>>, vector<64x128xf32>
    tpu.vector_store %arg8[%c192_44, %c0_45], %82 {strides = array<i32>} : memref<256x128xf32, #tpu.memory_space<vmem>>, vector<64x128xf32>,
    return
  }
  func.func @transform_0(%arg0: i32) -> (i32, i32) {
    %c0_i32 = arith.constant 0 : i32
    %c0_i32_0 = arith.constant 0 : i32
    return %arg0, %c0_i32 : i32, i32
  }
  func.func @transform_1(%arg0: i32) -> (i32, i32) {
    %c0_i32 = arith.constant 0 : i32
    %c0_i32_0 = arith.constant 0 : i32
    %c0_i32_1 = arith.constant 0 : i32
    return %c0_i32, %c0_i32_0 : i32, i32
  }
  func.func @transform_2(%arg0: i32) -> (i32, i32) {
    %c0_i32 = arith.constant 0 : i32
    %c0_i32_0 = arith.constant 0 : i32
    %c0_i32_1 = arith.constant 0 : i32
    return %c0_i32, %c0_i32_0 : i32, i32
  }
  func.func @transform_3(%arg0: i32) -> (i32, i32, i32) {
    %c0_i32 = arith.constant 0 : i32
    %c0_i32_0 = arith.constant 0 : i32
    %c0_i32_1 = arith.constant 0 : i32
    %c0_i32_2 = arith.constant 0 : i32
    return %c0_i32, %c0_i32_0, %c0_i32_1 : i32, i32, i32
  }
  func.func @transform_4(%arg0: i32) -> (i32, i32, i32) {
    %c0_i32 = arith.constant 0 : i32
    %c0_i32_0 = arith.constant 0 : i32
    %c0_i32_1 = arith.constant 0 : i32
    %c0_i32_2 = arith.constant 0 : i32
    return %c0_i32, %c0_i32_0, %c0_i32_1 : i32, i32, i32
  }
  func.func @transform_5(%arg0: i32) -> (i32, i32) {
    %c0_i32 = arith.constant 0 : i32
    %c0_i32_0 = arith.constant 0 : i32
    %c0_i32_1 = arith.constant 0 : i32
    return %c0_i32, %c0_i32_0 : i32, i32
  }
  func.func @transform_6(%arg0: i32) -> (i32, i32) {
    %c0_i32 = arith.constant 0 : i32
    %c0_i32_0 = arith.constant 0 : i32
    %c0_i32_1 = arith.constant 0 : i32
    return %c0_i32, %c0_i32_0 : i32, i32
  }
  func.func @transform_7(%arg0: i32) -> (i32, i32) {
    %c0_i32 = arith.constant 0 : i32
    %c0_i32_0 = arith.constant 0 : i32
    return %arg0, %c0_i32 : i32, i32
  }
}

</mosaic_0001>

<llo_original>
// kernel: net_forward.1
$region0: #{net_forward.1}
  #allocation0 [shape = 'u32[]', space=smem, size = 0x4, offset = 0x4, fixed_abs, tag = 'smem constant byte address 0x4 - core index']
  #allocation1 [shape = 'u32[144,128]{1,0:T(1,128)}', space=vmem, size = 0x12000, scoped, tag = 'internal scratch']
  %s0 = inlined_call_operand.vmem [shape: bf16[512,128], index: 0, kind: input, shape index: {}]
  %s1 = inlined_call_operand.vmem [shape: bf16[128,128], index: 1, kind: input, shape index: {}]
  %s2 = inlined_call_operand.vmem [shape: f32[1,128], index: 2, kind: input, shape index: {}]
  %s3 = inlined_call_operand.vmem [shape: bf16[2,128,128], index: 3, kind: input, shape index: {}]
  %s4 = inlined_call_operand.vmem [shape: f32[2,1,128], index: 4, kind: input, shape index: {}]
  %s5 = inlined_call_operand.vmem [shape: bf16[128,128], index: 5, kind: input, shape index: {}]
  %s6 = inlined_call_operand.vmem [shape: f32[1,128], index: 6, kind: input, shape index: {}]
  %s7 = inlined_call_operand.vmem [shape: f32[512,128], index: 7, kind: output, shape index: {}]
  %s8 = sld [smem:[#allocation0]]
  $region61: #{net_forward.1} parent=0
    _
  %s10 = ssub.s32 1, %s8
  %s11 = scalar_select 0, %s10, %s8
  loop: start=0, step=1, limit=4
  $region2: #{net_forward.1} parent=0 // loop_pre_header
    _
  $region3: #{net_forward.1} parent=0 // loop_header
    %s13 = sphi 0, %s17
    %p14 = scmp.ge.s32.totalorder %s13, 4
    %s23 = sphi 0, %s25
    %s26 = sphi 0, %s23
    %s27 = sphi 0, %s26
    %s43 = sphi 0, %s27
    %s47 = sphi 0, %s47
    %s49 = sphi 0, %s47
    %s50 = sphi 0, %s49
    %s64 = sphi 0, %s50
    %s68 = sphi 0, %s68
    %s70 = sphi 0, %s68
    %s71 = sphi 0, %s70
    %s85 = sphi 0, %s71
    %s89 = sphi 0, %s89
    %s91 = sphi 0, %s89
    %s92 = sphi 0, %s91
    %s106 = sphi 0, %s92
    %s110 = sphi 0, %s110
    %s112 = sphi 0, %s110
    %s113 = sphi 0, %s112
    %s127 = sphi 0, %s113
    %s131 = sphi 0, %s131
    %s133 = sphi 0, %s131
    %s134 = sphi 0, %s133
    %s148 = sphi 0, %s134
    %s152 = sphi 0, %s152
    %s154 = sphi 0, %s152
    %s155 = sphi 0, %s154
    %s169 = sphi 0, %s155
    %s175 = sphi 0, %s177
    %s178 = sphi 0, %s175
    %s179 = sphi 0, %s178
    %s195 = sphi 0, %s179
  $region4: #{net_forward.1} parent=0 // loop_header_branch
    %16 = sbr.rel (%p14) target = $region8
  $region5: #{net_forward.1} parent=0 // loop_body
    %s18 = ssub.s32 %s13, 1
    %s19 = ssub.s32 %s13, 2
    %s20 = sadd.s32 %s13, 1
    %s21 = ssub.s32 %s13, %s20
    %p22 = scmp.eq.s32.totalorder %s21, 0
    %s24 = sadd.s32 %s23, 1
    %s25 = scalar_select %p22, %s23, %s24
    %p28 = pneg %p22
    %p29 = scmp.eq.s32.totalorder %s13, 1
    %p30 = por %p28, %p29
    %p31 = scmp.ne.s32.totalorder %s23, %s26
    %p32 = scmp.eq.s32.totalorder %s13, 0
    %p33 = por %p31, %p32
    %p34 = scmp.ne.s32.totalorder %s23, %s26
    %p35 = scmp.eq.s32.totalorder %s18, 1
    %p36 = por %p34, %p35
    %p37 = scmp.ne.s32.totalorder %s26, %s27
    %p38 = scmp.eq.s32.totalorder %s18, 0
    %p39 = por %p37, %p38
    %p40 = scmp.ne.s32.totalorder %s26, %s27
    %p41 = scmp.eq.s32.totalorder %s19, 1
    %p42 = por %p40, %p41
    %p44 = scmp.ne.s32.totalorder %s27, %s43
    %p45 = scmp.eq.s32.totalorder %s19, 0
    %p46 = por %p44, %p45
    %s48 = sadd.s32 %s47, 1
    %p51 = scmp.eq.s32.totalorder %s13, 1
    %p52 = scmp.ne.s32.totalorder %s47, %s49
    %p53 = scmp.eq.s32.totalorder %s13, 0
    %p54 = por %p52, %p53
    %p55 = scmp.ne.s32.totalorder %s47, %s49
    %p56 = scmp.eq.s32.totalorder %s18, 1
    %p57 = por %p55, %p56
    %p58 = scmp.ne.s32.totalorder %s49, %s50
    %p59 = scmp.eq.s32.totalorder %s18, 0
    %p60 = por %p58, %p59
    %p61 = scmp.ne.s32.totalorder %s49, %s50
    %p62 = scmp.eq.s32.totalorder %s19, 1
    %p63 = por %p61, %p62
    %p65 = scmp.ne.s32.totalorder %s50, %s64
    %p66 = scmp.eq.s32.totalorder %s19, 0
    %p67 = por %p65, %p66
    %s69 = sadd.s32 %s68, 1
    %p72 = scmp.eq.s32.totalorder %s13, 1
    %p73 = scmp.ne.s32.totalorder %s68, %s70
    %p74 = scmp.eq.s32.totalorder %s13, 0
    %p75 = por %p73, %p74
    %p76 = scmp.ne.s32.totalorder %s68, %s70
    %p77 = scmp.eq.s32.totalorder %s18, 1
    %p78 = por %p76, %p77
    %p79 = scmp.ne.s32.totalorder %s70, %s71
    %p80 = scmp.eq.s32.totalorder %s18, 0
    %p81 = por %p79, %p80
    %p82 = scmp.ne.s32.totalorder %s70, %s71
    %p83 = scmp.eq.s32.totalorder %s19, 1
    %p84 = por %p82, %p83
    %p86 = scmp.ne.s32.totalorder %s71, %s85
    %p87 = scmp.eq.s32.totalorder %s19, 0
    %p88 = por %p86, %p87
    %s90 = sadd.s32 %s89, 1
    %p93 = scmp.eq.s32.totalorder %s13, 1
    %p94 = scmp.ne.s32.totalorder %s89, %s91
    %p95 = scmp.eq.s32.totalorder %s13, 0
    %p96 = por %p94, %p95
    %p97 = scmp.ne.s32.totalorder %s89, %s91
    %p98 = scmp.eq.s32.totalorder %s18, 1
    %p99 = por %p97, %p98
    %p100 = scmp.ne.s32.totalorder %s91, %s92
    %p101 = scmp.eq.s32.totalorder %s18, 0
    %p102 = por %p100, %p101
    %p103 = scmp.ne.s32.totalorder %s91, %s92
    %p104 = scmp.eq.s32.totalorder %s19, 1
    %p105 = por %p103, %p104
    %p107 = scmp.ne.s32.totalorder %s92, %s106
    %p108 = scmp.eq.s32.totalorder %s19, 0
    %p109 = por %p107, %p108
    %s111 = sadd.s32 %s110, 1
    %p114 = scmp.eq.s32.totalorder %s13, 1
    %p115 = scmp.ne.s32.totalorder %s110, %s112
    %p116 = scmp.eq.s32.totalorder %s13, 0
    %p117 = por %p115, %p116
    %p118 = scmp.ne.s32.totalorder %s110, %s112
    %p119 = scmp.eq.s32.totalorder %s18, 1
    %p120 = por %p118, %p119
    %p121 = scmp.ne.s32.totalorder %s112, %s113
    %p122 = scmp.eq.s32.totalorder %s18, 0
    %p123 = por %p121, %p122
    %p124 = scmp.ne.s32.totalorder %s112, %s113
    %p125 = scmp.eq.s32.totalorder %s19, 1
    %p126 = por %p124, %p125
    %p128 = scmp.ne.s32.totalorder %s113, %s127
    %p129 = scmp.eq.s32.totalorder %s19, 0
    %p130 = por %p128, %p129
    %s132 = sadd.s32 %s131, 1
    %p135 = scmp.eq.s32.totalorder %s13, 1
    %p136 = scmp.ne.s32.totalorder %s131, %s133
    %p137 = scmp.eq.s32.totalorder %s13, 0
    %p138 = por %p136, %p137
    %p139 = scmp.ne.s32.totalorder %s131, %s133
    %p140 = scmp.eq.s32.totalorder %s18, 1
    %p141 = por %p139, %p140
    %p142 = scmp.ne.s32.totalorder %s133, %s134
    %p143 = scmp.eq.s32.totalorder %s18, 0
    %p144 = por %p142, %p143
    %p145 = scmp.ne.s32.totalorder %s133, %s134
    %p146 = scmp.eq.s32.totalorder %s19, 1
    %p147 = por %p145, %p146
    %p149 = scmp.ne.s32.totalorder %s134, %s148
    %p150 = scmp.eq.s32.totalorder %s19, 0
    %p151 = por %p149, %p150
    %s153 = sadd.s32 %s152, 1
    %p156 = scmp.eq.s32.totalorder %s13, 1
    %p157 = scmp.ne.s32.totalorder %s152, %s154
    %p158 = scmp.eq.s32.totalorder %s13, 0
    %p159 = por %p157, %p158
    %p160 = scmp.ne.s32.totalorder %s152, %s154
    %p161 = scmp.eq.s32.totalorder %s18, 1
    %p162 = por %p160, %p161
    %p163 = scmp.ne.s32.totalorder %s154, %s155
    %p164 = scmp.eq.s32.totalorder %s18, 0
    %p165 = por %p163, %p164
    %p166 = scmp.ne.s32.totalorder %s154, %s155
    %p167 = scmp.eq.s32.totalorder %s19, 1
    %p168 = por %p166, %p167
    %p170 = scmp.ne.s32.totalorder %s155, %s169
    %p171 = scmp.eq.s32.totalorder %s19, 0
    %p172 = por %p170, %p171
    %s173 = ssub.s32 %s13, %s20
    %p174 = scmp.eq.s32.totalorder %s173, 0
    %s176 = sadd.s32 %s175, 1
    %s177 = scalar_select %p174, %s175, %s176
    %p180 = pneg %p174
    %p181 = scmp.eq.s32.totalorder %s13, 1
    %p182 = por %p180, %p181
    %p183 = scmp.ne.s32.totalorder %s175, %s178
    %p184 = scmp.eq.s32.totalorder %s13, 0
    %p185 = por %p183, %p184
    %p186 = scmp.ne.s32.totalorder %s175, %s178
    %p187 = scmp.eq.s32.totalorder %s18, 1
    %p188 = por %p186, %p187
    %p189 = scmp.ne.s32.totalorder %s178, %s179
    %p190 = scmp.eq.s32.totalorder %s18, 0
    %p191 = por %p189, %p190
    %p192 = scmp.ne.s32.totalorder %s178, %s179
    %p193 = scmp.eq.s32.totalorder %s19, 1
    %p194 = por %p192, %p193
    %p196 = scmp.ne.s32.totalorder %s179, %s195
    %p197 = scmp.eq.s32.totalorder %s19, 0
    %p198 = por %p196, %p197
    %p199 = scmp.le.s32.totalorder 1, %s13
    %p200 = scmp.lt.s32.totalorder %s13, 3
    %p201 = pnand %p199, %p200
    %p202 = pneg %p201
    // Predicated region
    $region9: #{net_forward.1} parent=5 // pred_check
      _
    $region10: #{net_forward.1} parent=5 // pred_check_branch
      %204 = sbr.rel (%p201) target = $region12
    $region11: #{net_forward.1} parent=5 // pred_region
      %s205 = ssub.s32 %s13, 1
      // Predicated region
      $region13: #{net_forward.1} parent=11 // pred_check
        %p206 = pneg %p60
      $region14: #{net_forward.1} parent=11 // pred_check_branch
        %208 = sbr.rel (%p206) target = $region16
      $region15: #{net_forward.1} parent=11 // pred_region
        _
      $region16: #{net_forward.1} parent=11 // pred_fallthru
        _
      // Predicated region
      $region17: #{net_forward.1} parent=11 // pred_check
        %p209 = pneg %p81
      $region18: #{net_forward.1} parent=11 // pred_check_branch
        %211 = sbr.rel (%p209) target = $region20
      $region19: #{net_forward.1} parent=11 // pred_region
        _
      $region20: #{net_forward.1} parent=11 // pred_fallthru
        _
      // Predicated region
      $region21: #{net_forward.1} parent=11 // pred_check
        %p212 = pneg %p102
      $region22: #{net_forward.1} parent=11 // pred_check_branch
        %214 = sbr.rel (%p212) target = $region24
      $region23: #{net_forward.1} parent=11 // pred_region
        _
      $region24: #{net_forward.1} parent=11 // pred_fallthru
        _
      // Predicated region
      $region25: #{net_forward.1} parent=11 // pred_check
        %p215 = pneg %p123
      $region26: #{net_forward.1} parent=11 // pred_check_branch
        %217 = sbr.rel (%p215) target = $region28
      $region27: #{net_forward.1} parent=11 // pred_region
        _
      $region28: #{net_forward.1} parent=11 // pred_fallthru
        _
      // Predicated region
      $region29: #{net_forward.1} parent=11 // pred_check
        %p218 = pneg %p144
      $region30: #{net_forward.1} parent=11 // pred_check_branch
        %220 = sbr.rel (%p218) target = $region32
      $region31: #{net_forward.1} parent=11 // pred_region
        _
      $region32: #{net_forward.1} parent=11 // pred_fallthru
        _
      // Predicated region
      $region33: #{net_forward.1} parent=11 // pred_check
        %p221 = pneg %p165
      $region34: #{net_forward.1} parent=11 // pred_check_branch
        %223 = sbr.rel (%p221) target = $region36
      $region35: #{net_forward.1} parent=11 // pred_region
        _
      $region36: #{net_forward.1} parent=11 // pred_fallthru
        _
    $region12: #{net_forward.1} parent=5 // pred_fallthru
      _
    %p224 = scmp.lt.s32.totalorder %s13, 2
    // Predicated region
    $region37: #{net_forward.1} parent=5 // pred_check
      %p225 = pneg %p224
    $region38: #{net_forward.1} parent=5 // pred_check_branch
      %227 = sbr.rel (%p225) target = $region40
    $region39: #{net_forward.1} parent=5 // pred_region
      // Predicated region
      $region41: #{net_forward.1} parent=39 // pred_check
        %p228 = pneg %p33
      $region42: #{net_forward.1} parent=39 // pred_check_branch
        %230 = sbr.rel (%p228) target = $region44
      $region43: #{net_forward.1} parent=39 // pred_region
        %s231 = smul.u32 32, %s13
        %p232 = scmp.lt.s32.totalorder %s231, 63
        %s233 = scalar_select %p232, %s231, 63
        %s234 = smul.addr %s233, 4
        %s235 = scalar_lea.vmem %s0, %s234
        %s236 = smul.u32 32, %s13
      $region44: #{net_forward.1} parent=39 // pred_fallthru
        _
    $region40: #{net_forward.1} parent=5 // pred_fallthru
      _
    %p237 = scmp.le.s32.totalorder 1, %s13
    %p238 = scmp.lt.s32.totalorder %s13, 3
    %p239 = pnand %p237, %p238
    %p240 = pneg %p239
    // Predicated region
    $region45: #{net_forward.1} parent=5 // pred_check
      _
    $region46: #{net_forward.1} parent=5 // pred_check_branch
      %242 = sbr.rel (%p239) target = $region48
    $region47: #{net_forward.1} parent=5 // pred_region
      %s243 = ssub.s32 %s13, 1
      %s244 = smul.u32 32, %s18
      %p245 = scmp.lt.s32.totalorder %s244, 63
      %s246 = scalar_select %p245, %s244, 63
      %s247 = smul.addr %s246, 4
      %s248 = scalar_lea.vmem %s0, %s247
      %p249 = pneg %p39
      %p250 = pneg %p36
      %p251 = pneg %p60
      %p252 = pneg %p57
      %p253 = pneg %p81
      %p254 = pneg %p78
      %p255 = pneg %p102
      %p256 = pneg %p99
      %p257 = pneg %p123
      %p258 = pneg %p120
      %p259 = pneg %p144
      %p260 = pneg %p141
      %p261 = pneg %p165
      %p262 = pneg %p162
      %p263 = pneg %p191
      %p264 = pneg %p188
      %s265 = smul.u32 32, %s18
      %p266 = scmp.lt.s32.totalorder %s265, 63
      %s267 = scalar_select %p266, %s265, 63
      %s268 = smul.addr %s267, 8
      %s269 = scalar_lea.vmem %s7, %s268
      %s270 = smul.u32 32, %s18
      %p271 = scmp.lt.s32.totalorder %s270, 63
      %s272 = scalar_select %p271, %s270, 63
      %s273 = smul.addr %s272, 4
      %s274 = scalar_lea.vmem %s0, %s273
      %s275 = smul.u32 32, %s18
      %s276 = smul.u32 32, %s18
      %p277 = scmp.lt.s32.totalorder %s276, 63
      %s278 = scalar_select %p277, %s276, 63
      %s279 = smul.addr %s278, 8
      %s280 = scalar_lea.vmem %s7, %s279
      %s281 = smul.u32 32, %s18
      %v283 = vld [vmem:[%s1] sm:$0xf]
      %v284 = vld [vmem:[%s1 + $0x4] sm:$0xf]
      %v285 = vld [vmem:[%s1 + $0x8] sm:$0xf]
      %v286 = vld [vmem:[%s1 + $0xc] sm:$0xf]
      %v287 = vld [vmem:[%s1 + $0x10] sm:$0xf]
      %v288 = vld [vmem:[%s1 + $0x14] sm:$0xf]
      %v289 = vld [vmem:[%s1 + $0x18] sm:$0xf]
      %v290 = vld [vmem:[%s1 + $0x1c] sm:$0xf]
      %v291 = vld [vmem:[%s1 + $0x20] sm:$0xf]
      %v292 = vld [vmem:[%s1 + $0x24] sm:$0xf]
      %v293 = vld [vmem:[%s1 + $0x28] sm:$0xf]
      %v294 = vld [vmem:[%s1 + $0x2c] sm:$0xf]
      %v295 = vld [vmem:[%s1 + $0x30] sm:$0xf]
      %v296 = vld [vmem:[%s1 + $0x34] sm:$0xf]
      %v297 = vld [vmem:[%s1 + $0x38] sm:$0xf]
      %v298 = vld [vmem:[%s1 + $0x3c] sm:$0xf]
      %v299 = vld [vmem:[%s5] sm:$0xf]
      %v300 = vld [vmem:[%s5 + $0x4] sm:$0xf]
      %v301 = vld [vmem:[%s5 + $0x8] sm:$0xf]
      %v302 = vld [vmem:[%s5 + $0xc] sm:$0xf]
      %v303 = vld [vmem:[%s5 + $0x10] sm:$0xf]
      %v304 = vld [vmem:[%s5 + $0x14] sm:$0xf]
      %v305 = vld [vmem:[%s5 + $0x18] sm:$0xf]
      %v306 = vld [vmem:[%s5 + $0x1c] sm:$0xf]
      %v307 = vld [vmem:[%s5 + $0x20] sm:$0xf]
      %v308 = vld [vmem:[%s5 + $0x24] sm:$0xf]
      %v309 = vld [vmem:[%s5 + $0x28] sm:$0xf]
      %v310 = vld [vmem:[%s5 + $0x2c] sm:$0xf]
      %v311 = vld [vmem:[%s5 + $0x30] sm:$0xf]
      %v312 = vld [vmem:[%s5 + $0x34] sm:$0xf]
      %v313 = vld [vmem:[%s5 + $0x38] sm:$0xf]
      %v314 = vld [vmem:[%s5 + $0x3c] sm:$0xf]
      %v315 = vld [vmem:[%s2] sm:$0x1]
      %v317 = vlaneseq
      %v318 = vshrl.u32 %v317, 7
      %v319 = vsub.s32 0, %v318
      %v320 = vrot.slane %v315, %v319
      %v322 = vld [vmem:[%s6] sm:$0x1]
      %v324 = vlaneseq
      %v325 = vshrl.u32 %v324, 7
      %v326 = vsub.s32 0, %v325
      %v327 = vrot.slane %v322, %v326
      %v329 = vld [vmem:[%s274] sm:$0xf]
      %v330 = vld [vmem:[%s274 + $0x4] sm:$0xf]
      %v331 = vld [vmem:[%s274 + $0x8] sm:$0xf]
      %v332 = vld [vmem:[%s274 + $0xc] sm:$0xf]
      %v333 = vld [vmem:[%s274 + $0x10] sm:$0xf]
      %v334 = vld [vmem:[%s274 + $0x14] sm:$0xf]
      %v335 = vld [vmem:[%s274 + $0x18] sm:$0xf]
      %v336 = vld [vmem:[%s274 + $0x1c] sm:$0xf]
      %v345 = vunpack.c.l.b16 %v329
      %v346 = vunpack.c.l.b16 %v330
      %v347 = vunpack.c.l.b16 %v331
      %v348 = vunpack.c.l.b16 %v332
      %v349 = vunpack.c.l.b16 %v333
      %v350 = vunpack.c.l.b16 %v334
      %v351 = vunpack.c.l.b16 %v335
      %v352 = vunpack.c.l.b16 %v336
      %v353 = vpack.c.b16 %v346, %v345
      %v354 = vpack.c.b16 %v348, %v347
      %v355 = vpack.c.b16 %v350, %v349
      %v356 = vpack.c.b16 %v352, %v351
      %v377 = vunpack.c.l.b16 %v283
      %v378 = vunpack.c.l.b16 %v284
      %v379 = vunpack.c.l.b16 %v285
      %v380 = vunpack.c.l.b16 %v286
      %v381 = vunpack.c.l.b16 %v287
      %v382 = vunpack.c.l.b16 %v288
      %v383 = vunpack.c.l.b16 %v289
      %v384 = vunpack.c.l.b16 %v290
      %v385 = vunpack.c.l.b16 %v291
      %v386 = vunpack.c.l.b16 %v292
      %v387 = vunpack.c.l.b16 %v293
      %v388 = vunpack.c.l.b16 %v294
      %v389 = vunpack.c.l.b16 %v295
      %v390 = vunpack.c.l.b16 %v296
      %v391 = vunpack.c.l.b16 %v297
      %v392 = vunpack.c.l.b16 %v298
      %v393 = vpack.c.b16 %v378, %v377
      %v394 = vpack.c.b16 %v380, %v379
      %v395 = vpack.c.b16 %v382, %v381
      %v396 = vpack.c.b16 %v384, %v383
      %v397 = vpack.c.b16 %v386, %v385
      %v398 = vpack.c.b16 %v388, %v387
      %v399 = vpack.c.b16 %v390, %v389
      %v400 = vpack.c.b16 %v392, %v391
      %409 = vmatprep.subr.bf16.mxu0 0
      %410 = vmatpush1.bf16.msra.mxu0 %v393
      %411 = vmatprep.subr.bf16.mxu0 0
      %412 = vmatpush1.bf16.msra.mxu0 %v394
      %413 = vmatprep.subr.bf16.mxu0 0
      %414 = vmatpush1.bf16.msra.mxu0 %v395
      %415 = vmatprep.subr.bf16.mxu0 0
      %416 = vmatpush1.bf16.msra.mxu0 %v396
      %417 = vmatprep.subr.bf16.mxu0 0
      %418 = vmatpush1.bf16.msra.mxu0 %v397
      %419 = vmatprep.subr.bf16.mxu0 0
      %420 = vmatpush1.bf16.msra.mxu0 %v398
      %421 = vmatprep.subr.bf16.mxu0 0
      %422 = vmatpush1.bf16.msra.mxu0 %v399
      %423 = vmatprep.subr.bf16.mxu0 0
      %424 = vmatpush1.bf16.msra.mxu0 %v400
      %425 = vmatprep.subr.bf16.mxu0 0
      %426 = vmatpush1.bf16.msra.mxu0 0
      %427 = vmatprep.subr.bf16.mxu0 0
      %428 = vmatpush1.bf16.msra.mxu0 0
      %429 = vmatprep.subr.bf16.mxu0 0
      %430 = vmatpush1.bf16.msra.mxu0 0
      %431 = vmatprep.subr.bf16.mxu0 0
      %432 = vmatpush1.bf16.msra.mxu0 0
      %433 = vmatprep.subr.bf16.mxu0 0
      %434 = vmatpush1.bf16.msra.mxu0 0
      %435 = vmatprep.subr.bf16.mxu0 0
      %436 = vmatpush1.bf16.msra.mxu0 0
      %437 = vmatprep.subr.bf16.mxu0 0
      %438 = vmatpush1.bf16.msra.mxu0 0
      %439 = vmatprep.subr.bf16.mxu0 0
      %440 = vmatpush1.bf16.msra.mxu0 0
      %441 = vmatprep.mubr.bf16.mxu0 0
      %442 = vmatmul.mubr.bf16.gmra.mrb[0].mxu0 %v353
      %v443 = vpop.f32.mrb[0].mxu0
      %v444 = vadd.f32 %v320, %v443
      %v445 = vpop.f32.mrb[0].mxu0
      %v446 = vpop.f32.mrb[0].mxu0
      %v447 = vadd.f32 %v320, %v446
      %v448 = vpop.f32.mrb[0].mxu0
      %449 = vmatprep.mubr.bf16.mxu0 0
      %450 = vmatmul.mubr.bf16.gmra.mrb[0].mxu0 %v354
      %v451 = vpop.f32.mrb[0].mxu0
      %v452 = vadd.f32 %v320, %v451
      %v453 = vpop.f32.mrb[0].mxu0
      %v454 = vpop.f32.mrb[0].mxu0
      %v455 = vadd.f32 %v320, %v454
      %v456 = vpop.f32.mrb[0].mxu0
      %457 = vmatprep.mubr.bf16.mxu0 0
      %458 = vmatmul.mubr.bf16.gmra.mrb[0].mxu0 %v355
      %v459 = vpop.f32.mrb[0].mxu0
      %v460 = vadd.f32 %v320, %v459
      %v461 = vpop.f32.mrb[0].mxu0
      %v462 = vpop.f32.mrb[0].mxu0
      %v463 = vadd.f32 %v320, %v462
      %v464 = vpop.f32.mrb[0].mxu0
      %465 = vmatprep.mubr.bf16.mxu0 0
      %466 = vmatmul.mubr.bf16.gmra.mrb[0].mxu0 %v356
      %v467 = vpop.f32.mrb[0].mxu0
      %v468 = vadd.f32 %v320, %v467
      %v469 = vpop.f32.mrb[0].mxu0
      %v470 = vpop.f32.mrb[0].mxu0
      %v471 = vadd.f32 %v320, %v470
      %v472 = vpop.f32.mrb[0].mxu0
      %473 = vdwg.mxu0
      %v474 = vtanh.pop %v444
      %v475 = vtanh.pop %v447
      %v476 = vtanh.pop %v452
      %v477 = vtanh.pop %v455
      %v478 = vtanh.pop %v460
      %v479 = vtanh.pop %v463
      %v480 = vtanh.pop %v468
      %v481 = vtanh.pop %v471
      %v482 = vld [vmem:[%s274 + $0x20] sm:$0xf]
      %v483 = vld [vmem:[%s274 + $0x24] sm:$0xf]
      %v484 = vld [vmem:[%s274 + $0x28] sm:$0xf]
      %v485 = vld [vmem:[%s274 + $0x2c] sm:$0xf]
      %v486 = vld [vmem:[%s274 + $0x30] sm:$0xf]
      %v487 = vld [vmem:[%s274 + $0x34] sm:$0xf]
      %v488 = vld [vmem:[%s274 + $0x38] sm:$0xf]
      %v489 = vld [vmem:[%s274 + $0x3c] sm:$0xf]
      %v498 = vunpack.c.l.b16 %v482
      %v499 = vunpack.c.l.b16 %v483
      %v500 = vunpack.c.l.b16 %v484
      %v501 = vunpack.c.l.b16 %v485
      %v502 = vunpack.c.l.b16 %v486
      %v503 = vunpack.c.l.b16 %v487
      %v504 = vunpack.c.l.b16 %v488
      %v505 = vunpack.c.l.b16 %v489
      %v506 = vpack.c.b16 %v499, %v498
      %v507 = vpack.c.b16 %v501, %v500
      %v508 = vpack.c.b16 %v503, %v502
      %v509 = vpack.c.b16 %v505, %v504
      %514 = vmatprep.subr.bf16.mxu0 0
      %515 = vmatpush1.bf16.msra.mxu0 %v393
      %516 = vmatprep.subr.bf16.mxu0 0
      %517 = vmatpush1.bf16.msra.mxu0 %v394
      %518 = vmatprep.subr.bf16.mxu0 0
      %519 = vmatpush1.bf16.msra.mxu0 %v395
      %520 = vmatprep.subr.bf16.mxu0 0
      %521 = vmatpush1.bf16.msra.mxu0 %v396
      %522 = vmatprep.subr.bf16.mxu0 0
      %523 = vmatpush1.bf16.msra.mxu0 %v397
      %524 = vmatprep.subr.bf16.mxu0 0
      %525 = vmatpush1.bf16.msra.mxu0 %v398
      %526 = vmatprep.subr.bf16.mxu0 0
      %527 = vmatpush1.bf16.msra.mxu0 %v399
      %528 = vmatprep.subr.bf16.mxu0 0
      %529 = vmatpush1.bf16.msra.mxu0 %v400
      %530 = vmatprep.subr.bf16.mxu0 0
      %531 = vmatpush1.bf16.msra.mxu0 0
      %532 = vmatprep.subr.bf16.mxu0 0
      %533 = vmatpush1.bf16.msra.mxu0 0
      %534 = vmatprep.subr.bf16.mxu0 0
      %535 = vmatpush1.bf16.msra.mxu0 0
      %536 = vmatprep.subr.bf16.mxu0 0
      %537 = vmatpush1.bf16.msra.mxu0 0
      %538 = vmatprep.subr.bf16.mxu0 0
      %539 = vmatpush1.bf16.msra.mxu0 0
      %540 = vmatprep.subr.bf16.mxu0 0
      %541 = vmatpush1.bf16.msra.mxu0 0
      %542 = vmatprep.subr.bf16.mxu0 0
      %543 = vmatpush1.bf16.msra.mxu0 0
      %544 = vmatprep.subr.bf16.mxu0 0
      %545 = vmatpush1.bf16.msra.mxu0 0
      %546 = vmatprep.mubr.bf16.mxu0 0
      %547 = vmatmul.mubr.bf16.gmra.mrb[0].mxu0 %v506
      %v548 = vpop.f32.mrb[0].mxu0
      %v549 = vadd.f32 %v320, %v548
      %v550 = vpop.f32.mrb[0].mxu0
      %v551 = vpop.f32.mrb[0].mxu0
      %v552 = vadd.f32 %v320, %v551
      %v553 = vpop.f32.mrb[0].mxu0
      %554 = vmatprep.mubr.bf16.mxu0 0
      %555 = vmatmul.mubr.bf16.gmra.mrb[0].mxu0 %v507
      %v556 = vpop.f32.mrb[0].mxu0
      %v557 = vadd.f32 %v320, %v556
      %v558 = vpop.f32.mrb[0].mxu0
      %v559 = vpop.f32.mrb[0].mxu0
      %v560 = vadd.f32 %v320, %v559
      %v561 = vpop.f32.mrb[0].mxu0
      %562 = vmatprep.mubr.bf16.mxu0 0
      %563 = vmatmul.mubr.bf16.gmra.mrb[0].mxu0 %v508
      %v564 = vpop.f32.mrb[0].mxu0
      %v565 = vadd.f32 %v320, %v564
      %v566 = vpop.f32.mrb[0].mxu0
      %v567 = vpop.f32.mrb[0].mxu0
      %v568 = vadd.f32 %v320, %v567
      %v569 = vpop.f32.mrb[0].mxu0
      %570 = vmatprep.mubr.bf16.mxu0 0
      %571 = vmatmul.mubr.bf16.gmra.mrb[0].mxu0 %v509
      %v572 = vpop.f32.mrb[0].mxu0
      %v573 = vadd.f32 %v320, %v572
      %v574 = vpop.f32.mrb[0].mxu0
      %v575 = vpop.f32.mrb[0].mxu0
      %v576 = vadd.f32 %v320, %v575
      %v577 = vpop.f32.mrb[0].mxu0
      %578 = vdwg.mxu0
      %v579 = vtanh.pop %v549
      %v580 = vtanh.pop %v552
      %v581 = vtanh.pop %v557
      %v582 = vtanh.pop %v560
      %v583 = vtanh.pop %v565
      %v584 = vtanh.pop %v568
      %v585 = vtanh.pop %v573
      %v586 = vtanh.pop %v576
      %v587 = vld [vmem:[%s274 + $0x40] sm:$0xf]
      %v588 = vld [vmem:[%s274 + $0x44] sm:$0xf]
      %v589 = vld [vmem:[%s274 + $0x48] sm:$0xf]
      %v590 = vld [vmem:[%s274 + $0x4c] sm:$0xf]
      %v591 = vld [vmem:[%s274 + $0x50] sm:$0xf]
      %v592 = vld [vmem:[%s274 + $0x54] sm:$0xf]
      %v593 = vld [vmem:[%s274 + $0x58] sm:$0xf]
      %v594 = vld [vmem:[%s274 + $0x5c] sm:$0xf]
      %v603 = vunpack.c.l.b16 %v587
      %v604 = vunpack.c.l.b16 %v588
      %v605 = vunpack.c.l.b16 %v589
      %v606 = vunpack.c.l.b16 %v590
      %v607 = vunpack.c.l.b16 %v591
      %v608 = vunpack.c.l.b16 %v592
      %v609 = vunpack.c.l.b16 %v593
      %v610 = vunpack.c.l.b16 %v594
      %v611 = vpack.c.b16 %v604, %v603
      %v612 = vpack.c.b16 %v606, %v605
      %v613 = vpack.c.b16 %v608, %v607
      %v614 = vpack.c.b16 %v610, %v609
      %619 = vmatprep.subr.bf16.mxu0 0
      %620 = vmatpush1.bf16.msra.mxu0 %v393
      %621 = vmatprep.subr.bf16.mxu0 0
      %622 = vmatpush1.bf16.msra.mxu0 %v394
      %623 = vmatprep.subr.bf16.mxu0 0
      %624 = vmatpush1.bf16.msra.mxu0 %v395
      %625 = vmatprep.subr.bf16.mxu0 0
      %626 = vmatpush1.bf16.msra.mxu0 %v396
      %627 = vmatprep.subr.bf16.mxu0 0
      %628 = vmatpush1.bf16.msra.mxu0 %v397
      %629 = vmatprep.subr.bf16.mxu0 0
      %630 = vmatpush1.bf16.msra.mxu0 %v398
      %631 = vmatprep.subr.bf16.mxu0 0
      %632 = vmatpush1.bf16.msra.mxu0 %v399
      %633 = vmatprep.subr.bf16.mxu0 0
      %634 = vmatpush1.bf16.msra.mxu0 %v400
      %635 = vmatprep.subr.bf16.mxu0 0
      %636 = vmatpush1.bf16.msra.mxu0 0
      %637 = vmatprep.subr.bf16.mxu0 0
      %638 = vmatpush1.bf16.msra.mxu0 0
      %639 = vmatprep.subr.bf16.mxu0 0
      %640 = vmatpush1.bf16.msra.mxu0 0
      %641 = vmatprep.subr.bf16.mxu0 0
      %642 = vmatpush1.bf16.msra.mxu0 0
      %643 = vmatprep.subr.bf16.mxu0 0
      %644 = vmatpush1.bf16.msra.mxu0 0
      %645 = vmatprep.subr.bf16.mxu0 0
      %646 = vmatpush1.bf16.msra.mxu0 0
      %647 = vmatprep.subr.bf16.mxu0 0
      %648 = vmatpush1.bf16.msra.mxu0 0
      %649 = vmatprep.subr.bf16.mxu0 0
      %650 = vmatpush1.bf16.msra.mxu0 0
      %651 = vmatprep.mubr.bf16.mxu0 0
      %652 = vmatmul.mubr.bf16.gmra.mrb[0].mxu0 %v611
      %v653 = vpop.f32.mrb[0].mxu0
      %v654 = vadd.f32 %v320, %v653
      %v655 = vpop.f32.mrb[0].mxu0
      %v656 = vpop.f32.mrb[0].mxu0
      %v657 = vadd.f32 %v320, %v656
      %v658 = vpop.f32.mrb[0].mxu0
      %659 = vmatprep.mubr.bf16.mxu0 0
      %660 = vmatmul.mubr.bf16.gmra.mrb[0].mxu0 %v612
      %v661 = vpop.f32.mrb[0].mxu0
      %v662 = vadd.f32 %v320, %v661
      %v663 = vpop.f32.mrb[0].mxu0
      %v664 = vpop.f32.mrb[0].mxu0
      %v665 = vadd.f32 %v320, %v664
      %v666 = vpop.f32.mrb[0].mxu0
      %667 = vmatprep.mubr.bf16.mxu0 0
      %668 = vmatmul.mubr.bf16.gmra.mrb[0].mxu0 %v613
      %v669 = vpop.f32.mrb[0].mxu0
      %v670 = vadd.f32 %v320, %v669
      %v671 = vpop.f32.mrb[0].mxu0
      %v672 = vpop.f32.mrb[0].mxu0
      %v673 = vadd.f32 %v320, %v672
      %v674 = vpop.f32.mrb[0].mxu0
      %675 = vmatprep.mubr.bf16.mxu0 0
      %676 = vmatmul.mubr.bf16.gmra.mrb[0].mxu0 %v614
      %v677 = vpop.f32.mrb[0].mxu0
      %v678 = vadd.f32 %v320, %v677
      %v679 = vpop.f32.mrb[0].mxu0
      %v680 = vpop.f32.mrb[0].mxu0
      %v681 = vadd.f32 %v320, %v680
      %v682 = vpop.f32.mrb[0].mxu0
      %683 = vdwg.mxu0
      %v684 = vtanh.pop %v654
      %v685 = vtanh.pop %v657
      %v686 = vtanh.pop %v662
      %v687 = vtanh.pop %v665
      %v688 = vtanh.pop %v670
      %v689 = vtanh.pop %v673
      %v690 = vtanh.pop %v678
      %v691 = vtanh.pop %v681
      %v692 = vld [vmem:[%s274 + $0x60] sm:$0xf]
      %v693 = vld [vmem:[%s274 + $0x64] sm:$0xf]
      %v694 = vld [vmem:[%s274 + $0x68] sm:$0xf]
      %v695 = vld [vmem:[%s274 + $0x6c] sm:$0xf]
      %v696 = vld [vmem:[%s274 + $0x70] sm:$0xf]
      %v697 = vld [vmem:[%s274 + $0x74] sm:$0xf]
      %v698 = vld [vmem:[%s274 + $0x78] sm:$0xf]
      %v699 = vld [vmem:[%s274 + $0x7c] sm:$0xf]
      %v708 = vunpack.c.l.b16 %v692
      %v709 = vunpack.c.l.b16 %v693
      %v710 = vunpack.c.l.b16 %v694
      %v711 = vunpack.c.l.b16 %v695
      %v712 = vunpack.c.l.b16 %v696
      %v713 = vunpack.c.l.b16 %v697
      %v714 = vunpack.c.l.b16 %v698
      %v715 = vunpack.c.l.b16 %v699
      %v716 = vpack.c.b16 %v709, %v708
      %v717 = vpack.c.b16 %v711, %v710
      %v718 = vpack.c.b16 %v713, %v712
      %v719 = vpack.c.b16 %v715, %v714
      %724 = vmatprep.subr.bf16.mxu0 0
      %725 = vmatpush1.bf16.msra.mxu0 %v393
      %726 = vmatprep.subr.bf16.mxu0 0
      %727 = vmatpush1.bf16.msra.mxu0 %v394
      %728 = vmatprep.subr.bf16.mxu0 0
      %729 = vmatpush1.bf16.msra.mxu0 %v395
      %730 = vmatprep.subr.bf16.mxu0 0
      %731 = vmatpush1.bf16.msra.mxu0 %v396
      %732 = vmatprep.subr.bf16.mxu0 0
      %733 = vmatpush1.bf16.msra.mxu0 %v397
      %734 = vmatprep.subr.bf16.mxu0 0
      %735 = vmatpush1.bf16.msra.mxu0 %v398
      %736 = vmatprep.subr.bf16.mxu0 0
      %737 = vmatpush1.bf16.msra.mxu0 %v399
      %738 = vmatprep.subr.bf16.mxu0 0
      %739 = vmatpush1.bf16.msra.mxu0 %v400
      %740 = vmatprep.subr.bf16.mxu0 0
      %741 = vmatpush1.bf16.msra.mxu0 0
      %742 = vmatprep.subr.bf16.mxu0 0
      %743 = vmatpush1.bf16.msra.mxu0 0
      %744 = vmatprep.subr.bf16.mxu0 0
      %745 = vmatpush1.bf16.msra.mxu0 0
      %746 = vmatprep.subr.bf16.mxu0 0
      %747 = vmatpush1.bf16.msra.mxu0 0
      %748 = vmatprep.subr.bf16.mxu0 0
      %749 = vmatpush1.bf16.msra.mxu0 0
      %750 = vmatprep.subr.bf16.mxu0 0
      %751 = vmatpush1.bf16.msra.mxu0 0
      %752 = vmatprep.subr.bf16.mxu0 0
      %753 = vmatpush1.bf16.msra.mxu0 0
      %754 = vmatprep.subr.bf16.mxu0 0
      %755 = vmatpush1.bf16.msra.mxu0 0
      %756 = vmatprep.mubr.bf16.mxu0 0
      %757 = vmatmul.mubr.bf16.gmra.mrb[0].mxu0 %v716
      %v758 = vpop.f32.mrb[0].mxu0
      %v759 = vadd.f32 %v320, %v758
      %v760 = vpop.f32.mrb[0].mxu0
      %v761 = vpop.f32.mrb[0].mxu0
      %v762 = vadd.f32 %v320, %v761
      %v763 = vpop.f32.mrb[0].mxu0
      %764 = vmatprep.mubr.bf16.mxu0 0
      %765 = vmatmul.mubr.bf16.gmra.mrb[0].mxu0 %v717
      %v766 = vpop.f32.mrb[0].mxu0
      %v767 = vadd.f32 %v320, %v766
      %v768 = vpop.f32.mrb[0].mxu0
      %v769 = vpop.f32.mrb[0].mxu0
      %v770 = vadd.f32 %v320, %v769
      %v771 = vpop.f32.mrb[0].mxu0
      %772 = vmatprep.mubr.bf16.mxu0 0
      %773 = vmatmul.mubr.bf16.gmra.mrb[0].mxu0 %v718
      %v774 = vpop.f32.mrb[0].mxu0
      %v775 = vadd.f32 %v320, %v774
      %v776 = vpop.f32.mrb[0].mxu0
      %v777 = vpop.f32.mrb[0].mxu0
      %v778 = vadd.f32 %v320, %v777
      %v779 = vpop.f32.mrb[0].mxu0
      %780 = vmatprep.mubr.bf16.mxu0 0
      %781 = vmatmul.mubr.bf16.gmra.mrb[0].mxu0 %v719
      %v782 = vpop.f32.mrb[0].mxu0
      %v783 = vadd.f32 %v320, %v782
      %v784 = vpop.f32.mrb[0].mxu0
      %v785 = vpop.f32.mrb[0].mxu0
      %v786 = vadd.f32 %v320, %v785
      %v787 = vpop.f32.mrb[0].mxu0
      %788 = vdwg.mxu0
      %v789 = vtanh.pop %v759
      %v790 = vtanh.pop %v762
      %v791 = vtanh.pop %v767
      %v792 = vtanh.pop %v770
      %v793 = vtanh.pop %v775
      %v794 = vtanh.pop %v778
      %v795 = vtanh.pop %v783
      %v796 = vtanh.pop %v786
      %v797 = vld [vmem:[%s3] sm:$0xf]
      %v798 = vld [vmem:[%s3 + $0x4] sm:$0xf]
      %v799 = vld [vmem:[%s3 + $0x8] sm:$0xf]
      %v800 = vld [vmem:[%s3 + $0xc] sm:$0xf]
      %v801 = vld [vmem:[%s3 + $0x10] sm:$0xf]
      %v802 = vld [vmem:[%s3 + $0x14] sm:$0xf]
      %v803 = vld [vmem:[%s3 + $0x18] sm:$0xf]
      %v804 = vld [vmem:[%s3 + $0x1c] sm:$0xf]
      %v805 = vld [vmem:[%s3 + $0x20] sm:$0xf]
      %v806 = vld [vmem:[%s3 + $0x24] sm:$0xf]
      %v807 = vld [vmem:[%s3 + $0x28] sm:$0xf]
      %v808 = vld [vmem:[%s3 + $0x2c] sm:$0xf]
      %v809 = vld [vmem:[%s3 + $0x30] sm:$0xf]
      %v810 = vld [vmem:[%s3 + $0x34] sm:$0xf]
      %v811 = vld [vmem:[%s3 + $0x38] sm:$0xf]
      %v812 = vld [vmem:[%s3 + $0x3c] sm:$0xf]
      %v813 = vld [vmem:[%s4] sm:$0x1]
      %v815 = vlaneseq
      %v816 = vshrl.u32 %v815, 7
      %v817 = vsub.s32 0, %v816
      %v818 = vrot.slane %v813, %v817
      %v820 = vpack.c.bf16 %v475, %v474
      %v821 = vpack.c.bf16 %v477, %v476
      %v822 = vpack.c.bf16 %v479, %v478
      %v823 = vpack.c.bf16 %v481, %v480
      %v840 = vunpack.c.l.b16 %v797
      %v841 = vunpack.c.l.b16 %v798
      %v842 = vunpack.c.l.b16 %v799
      %v843 = vunpack.c.l.b16 %v800
      %v844 = vunpack.c.l.b16 %v801
      %v845 = vunpack.c.l.b16 %v802
      %v846 = vunpack.c.l.b16 %v803
      %v847 = vunpack.c.l.b16 %v804
      %v848 = vunpack.c.l.b16 %v805
      %v849 = vunpack.c.l.b16 %v806
      %v850 = vunpack.c.l.b16 %v807
      %v851 = vunpack.c.l.b16 %v808
      %v852 = vunpack.c.l.b16 %v809
      %v853 = vunpack.c.l.b16 %v810
      %v854 = vunpack.c.l.b16 %v811
      %v855 = vunpack.c.l.b16 %v812
      %v856 = vpack.c.b16 %v841, %v840
      %v857 = vpack.c.b16 %v843, %v842
      %v858 = vpack.c.b16 %v845, %v844
      %v859 = vpack.c.b16 %v847, %v846
      %v860 = vpack.c.b16 %v849, %v848
      %v861 = vpack.c.b16 %v851, %v850
      %v862 = vpack.c.b16 %v853, %v852
      %v863 = vpack.c.b16 %v855, %v854
      %872 = vmatprep.subr.bf16.mxu0 0
      %873 = vmatpush1.bf16.msra.mxu0 %v856
      %874 = vmatprep.subr.bf16.mxu0 0
      %875 = vmatpush1.bf16.msra.mxu0 %v857
      %876 = vmatprep.subr.bf16.mxu0 0
      %877 = vmatpush1.bf16.msra.mxu0 %v858
      %878 = vmatprep.subr.bf16.mxu0 0
      %879 = vmatpush1.bf16.msra.mxu0 %v859
      %880 = vmatprep.subr.bf16.mxu0 0
      %881 = vmatpush1.bf16.msra.mxu0 %v860
      %882 = vmatprep.subr.bf16.mxu0 0
      %883 = vmatpush1.bf16.msra.mxu0 %v861
      %884 = vmatprep.subr.bf16.mxu0 0
      %885 = vmatpush1.bf16.msra.mxu0 %v862
      %886 = vmatprep.subr.bf16.mxu0 0
      %887 = vmatpush1.bf16.msra.mxu0 %v863
      %888 = vmatprep.subr.bf16.mxu0 0
      %889 = vmatpush1.bf16.msra.mxu0 0
      %890 = vmatprep.subr.bf16.mxu0 0
      %891 = vmatpush1.bf16.msra.mxu0 0
      %892 = vmatprep.subr.bf16.mxu0 0
      %893 = vmatpush1.bf16.msra.mxu0 0
      %894 = vmatprep.subr.bf16.mxu0 0
      %895 = vmatpush1.bf16.msra.mxu0 0
      %896 = vmatprep.subr.bf16.mxu0 0
      %897 = vmatpush1.bf16.msra.mxu0 0
      %898 = vmatprep.subr.bf16.mxu0 0
      %899 = vmatpush1.bf16.msra.mxu0 0
      %900 = vmatprep.subr.bf16.mxu0 0
      %901 = vmatpush1.bf16.msra.mxu0 0
      %902 = vmatprep.subr.bf16.mxu0 0
      %903 = vmatpush1.bf16.msra.mxu0 0
      %904 = vmatprep.mubr.bf16.mxu0 0
      %905 = vmatmul.mubr.bf16.gmra.mrb[0].mxu0 %v820
      %v906 = vpop.f32.mrb[0].mxu0
      %v907 = vadd.f32 %v818, %v906
      %v908 = vpop.f32.mrb[0].mxu0
      %v909 = vpop.f32.mrb[0].mxu0
      %v910 = vadd.f32 %v818, %v909
      %v911 = vpop.f32.mrb[0].mxu0
      %912 = vmatprep.mubr.bf16.mxu0 0
      %913 = vmatmul.mubr.bf16.gmra.mrb[0].mxu0 %v821
      %v914 = vpop.f32.mrb[0].mxu0
      %v915 = vadd.f32 %v818, %v914
      %v916 = vpop.f32.mrb[0].mxu0
      %v917 = vpop.f32.mrb[0].mxu0
      %v918 = vadd.f32 %v818, %v917
      %v919 = vpop.f32.mrb[0].mxu0
      %920 = vmatprep.mubr.bf16.mxu0 0
      %921 = vmatmul.mubr.bf16.gmra.mrb[0].mxu0 %v822
      %v922 = vpop.f32.mrb[0].mxu0
      %v923 = vadd.f32 %v818, %v922
      %v924 = vpop.f32.mrb[0].mxu0
      %v925 = vpop.f32.mrb[0].mxu0
      %v926 = vadd.f32 %v818, %v925
      %v927 = vpop.f32.mrb[0].mxu0
      %928 = vmatprep.mubr.bf16.mxu0 0
      %929 = vmatmul.mubr.bf16.gmra.mrb[0].mxu0 %v823
      %v930 = vpop.f32.mrb[0].mxu0
      %v931 = vadd.f32 %v818, %v930
      %v932 = vpop.f32.mrb[0].mxu0
      %v933 = vpop.f32.mrb[0].mxu0
      %v934 = vadd.f32 %v818, %v933
      %v935 = vpop.f32.mrb[0].mxu0
      %936 = vdwg.mxu0
      %v937 = vtanh.pop %v907
      %v938 = vtanh.pop %v910
      %v939 = vtanh.pop %v915
      %v940 = vtanh.pop %v918
      %v941 = vtanh.pop %v923
      %v942 = vtanh.pop %v926
      %v943 = vtanh.pop %v931
      %v944 = vtanh.pop %v934
      %v945 = vpack.c.bf16 %v580, %v579
      %v946 = vpack.c.bf16 %v582, %v581
      %v947 = vpack.c.bf16 %v584, %v583
      %v948 = vpack.c.bf16 %v586, %v585
      %949 = vmatprep.subr.bf16.mxu0 0
      %950 = vmatpush1.bf16.msra.mxu0 %v856
      %951 = vmatprep.subr.bf16.mxu0 0
      %952 = vmatpush1.bf16.msra.mxu0 %v857
      %953 = vmatprep.subr.bf16.mxu0 0
      %954 = vmatpush1.bf16.msra.mxu0 %v858
      %955 = vmatprep.subr.bf16.mxu0 0
      %956 = vmatpush1.bf16.msra.mxu0 %v859
      %957 = vmatprep.subr.bf16.mxu0 0
      %958 = vmatpush1.bf16.msra.mxu0 %v860
      %959 = vmatprep.subr.bf16.mxu0 0
      %960 = vmatpush1.bf16.msra.mxu0 %v861
      %961 = vmatprep.subr.bf16.mxu0 0
      %962 = vmatpush1.bf16.msra.mxu0 %v862
      %963 = vmatprep.subr.bf16.mxu0 0
      %964 = vmatpush1.bf16.msra.mxu0 %v863
      %965 = vmatprep.subr.bf16.mxu0 0
      %966 = vmatpush1.bf16.msra.mxu0 0
      %967 = vmatprep.subr.bf16.mxu0 0
      %968 = vmatpush1.bf16.msra.mxu0 0
      %969 = vmatprep.subr.bf16.mxu0 0
      %970 = vmatpush1.bf16.msra.mxu0 0
      %971 = vmatprep.subr.bf16.mxu0 0
      %972 = vmatpush1.bf16.msra.mxu0 0
      %973 = vmatprep.subr.bf16.mxu0 0
      %974 = vmatpush1.bf16.msra.mxu0 0
      %975 = vmatprep.subr.bf16.mxu0 0
      %976 = vmatpush1.bf16.msra.mxu0 0
      %977 = vmatprep.subr.bf16.mxu0 0
      %978 = vmatpush1.bf16.msra.mxu0 0
      %979 = vmatprep.subr.bf16.mxu0 0
      %980 = vmatpush1.bf16.msra.mxu0 0
      %981 = vmatprep.mubr.bf16.mxu0 0
      %982 = vmatmul.mubr.bf16.gmra.mrb[0].mxu0 %v945
      %v983 = vpop.f32.mrb[0].mxu0
      %v984 = vadd.f32 %v818, %v983
      %v985 = vpop.f32.mrb[0].mxu0
      %v986 = vpop.f32.mrb[0].mxu0
      %v987 = vadd.f32 %v818, %v986
      %v988 = vpop.f32.mrb[0].mxu0
      %989 = vmatprep.mubr.bf16.mxu0 0
      %990 = vmatmul.mubr.bf16.gmra.mrb[0].mxu0 %v946
      %v991 = vpop.f32.mrb[0].mxu0
      %v992 = vadd.f32 %v818, %v991
      %v993 = vpop.f32.mrb[0].mxu0
      %v994 = vpop.f32.mrb[0].mxu0
      %v995 = vadd.f32 %v818, %v994
      %v996 = vpop.f32.mrb[0].mxu0
      %997 = vmatprep.mubr.bf16.mxu0 0
      %998 = vmatmul.mubr.bf16.gmra.mrb[0].mxu0 %v947
      %v999 = vpop.f32.mrb[0].mxu0
      %v1000 = vadd.f32 %v818, %v999
      %v1001 = vpop.f32.mrb[0].mxu0
      %v1002 = vpop.f32.mrb[0].mxu0
      %v1003 = vadd.f32 %v818, %v1002
      %v1004 = vpop.f32.mrb[0].mxu0
      %1005 = vmatprep.mubr.bf16.mxu0 0
      %1006 = vmatmul.mubr.bf16.gmra.mrb[0].mxu0 %v948
      %v1007 = vpop.f32.mrb[0].mxu0
      %v1008 = vadd.f32 %v818, %v1007
      %v1009 = vpop.f32.mrb[0].mxu0
      %v1010 = vpop.f32.mrb[0].mxu0
      %v1011 = vadd.f32 %v818, %v1010
      %v1012 = vpop.f32.mrb[0].mxu0
      %1013 = vdwg.mxu0
      %v1014 = vtanh.pop %v984
      %v1015 = vtanh.pop %v987
      %v1016 = vtanh.pop %v992
      %v1017 = vtanh.pop %v995
      %v1018 = vtanh.pop %v1000
      %v1019 = vtanh.pop %v1003
      %v1020 = vtanh.pop %v1008
      %v1021 = vtanh.pop %v1011
      %v1022 = vpack.c.bf16 %v685, %v684
      %v1023 = vpack.c.bf16 %v687, %v686
      %v1024 = vpack.c.bf16 %v689, %v688
      %v1025 = vpack.c.bf16 %v691, %v690
      %1026 = vmatprep.subr.bf16.mxu0 0
      %1027 = vmatpush1.bf16.msra.mxu0 %v856
      %1028 = vmatprep.subr.bf16.mxu0 0
      %1029 = vmatpush1.bf16.msra.mxu0 %v857
      %1030 = vmatprep.subr.bf16.mxu0 0
      %1031 = vmatpush1.bf16.msra.mxu0 %v858
      %1032 = vmatprep.subr.bf16.mxu0 0
      %1033 = vmatpush1.bf16.msra.mxu0 %v859
      %1034 = vmatprep.subr.bf16.mxu0 0
      %1035 = vmatpush1.bf16.msra.mxu0 %v860
      %1036 = vmatprep.subr.bf16.mxu0 0
      %1037 = vmatpush1.bf16.msra.mxu0 %v861
      %1038 = vmatprep.subr.bf16.mxu0 0
      %1039 = vmatpush1.bf16.msra.mxu0 %v862
      %1040 = vmatprep.subr.bf16.mxu0 0
      %1041 = vmatpush1.bf16.msra.mxu0 %v863
      %1042 = vmatprep.subr.bf16.mxu0 0
      %1043 = vmatpush1.bf16.msra.mxu0 0
      %1044 = vmatprep.subr.bf16.mxu0 0
      %1045 = vmatpush1.bf16.msra.mxu0 0
      %1046 = vmatprep.subr.bf16.mxu0 0
      %1047 = vmatpush1.bf16.msra.mxu0 0
      %1048 = vmatprep.subr.bf16.mxu0 0
      %1049 = vmatpush1.bf16.msra.mxu0 0
      %1050 = vmatprep.subr.bf16.mxu0 0
      %1051 = vmatpush1.bf16.msra.mxu0 0
      %1052 = vmatprep.subr.bf16.mxu0 0
      %1053 = vmatpush1.bf16.msra.mxu0 0
      %1054 = vmatprep.subr.bf16.mxu0 0
      %1055 = vmatpush1.bf16.msra.mxu0 0
      %1056 = vmatprep.subr.bf16.mxu0 0
      %1057 = vmatpush1.bf16.msra.mxu0 0
      %1058 = vmatprep.mubr.bf16.mxu0 0
      %1059 = vmatmul.mubr.bf16.gmra.mrb[0].mxu0 %v1022
      %v1060 = vpop.f32.mrb[0].mxu0
      %v1061 = vadd.f32 %v818, %v1060
      %v1062 = vpop.f32.mrb[0].mxu0
      %v1063 = vpop.f32.mrb[0].mxu0
      %v1064 = vadd.f32 %v818, %v1063
      %v1065 = vpop.f32.mrb[0].mxu0
      %1066 = vmatprep.mubr.bf16.mxu0 0
      %1067 = vmatmul.mubr.bf16.gmra.mrb[0].mxu0 %v1023
      %v1068 = vpop.f32.mrb[0].mxu0
      %v1069 = vadd.f32 %v818, %v1068
      %v1070 = vpop.f32.mrb[0].mxu0
      %v1071 = vpop.f32.mrb[0].mxu0
      %v1072 = vadd.f32 %v818, %v1071
      %v1073 = vpop.f32.mrb[0].mxu0
      %1074 = vmatprep.mubr.bf16.mxu0 0
      %1075 = vmatmul.mubr.bf16.gmra.mrb[0].mxu0 %v1024
      %v1076 = vpop.f32.mrb[0].mxu0
      %v1077 = vadd.f32 %v818, %v1076
      %v1078 = vpop.f32.mrb[0].mxu0
      %v1079 = vpop.f32.mrb[0].mxu0
      %v1080 = vadd.f32 %v818, %v1079
      %v1081 = vpop.f32.mrb[0].mxu0
      %1082 = vmatprep.mubr.bf16.mxu0 0
      %1083 = vmatmul.mubr.bf16.gmra.mrb[0].mxu0 %v1025
      %v1084 = vpop.f32.mrb[0].mxu0
      %v1085 = vadd.f32 %v818, %v1084
      %v1086 = vpop.f32.mrb[0].mxu0
      %v1087 = vpop.f32.mrb[0].mxu0
      %v1088 = vadd.f32 %v818, %v1087
      %v1089 = vpop.f32.mrb[0].mxu0
      %1090 = vdwg.mxu0
      %v1091 = vtanh.pop %v1061
      %v1092 = vtanh.pop %v1064
      %v1093 = vtanh.pop %v1069
      %v1094 = vtanh.pop %v1072
      %v1095 = vtanh.pop %v1077
      %v1096 = vtanh.pop %v1080
      %v1097 = vtanh.pop %v1085
      %v1098 = vtanh.pop %v1088
      %v1099 = vpack.c.bf16 %v790, %v789
      %v1100 = vpack.c.bf16 %v792, %v791
      %v1101 = vpack.c.bf16 %v794, %v793
      %v1102 = vpack.c.bf16 %v796, %v795
      %1103 = vmatprep.subr.bf16.mxu0 0
      %1104 = vmatpush1.bf16.msra.mxu0 %v856
      %1105 = vmatprep.subr.bf16.mxu0 0
      %1106 = vmatpush1.bf16.msra.mxu0 %v857
      %1107 = vmatprep.subr.bf16.mxu0 0
      %1108 = vmatpush1.bf16.msra.mxu0 %v858
      %1109 = vmatprep.subr.bf16.mxu0 0
      %1110 = vmatpush1.bf16.msra.mxu0 %v859
      %1111 = vmatprep.subr.bf16.mxu0 0
      %1112 = vmatpush1.bf16.msra.mxu0 %v860
      %1113 = vmatprep.subr.bf16.mxu0 0
      %1114 = vmatpush1.bf16.msra.mxu0 %v861
      %1115 = vmatprep.subr.bf16.mxu0 0
      %1116 = vmatpush1.bf16.msra.mxu0 %v862
      %1117 = vmatprep.subr.bf16.mxu0 0
      %1118 = vmatpush1.bf16.msra.mxu0 %v863
      %1119 = vmatprep.subr.bf16.mxu0 0
      %1120 = vmatpush1.bf16.msra.mxu0 0
      %1121 = vmatprep.subr.bf16.mxu0 0
      %1122 = vmatpush1.bf16.msra.mxu0 0
      %1123 = vmatprep.subr.bf16.mxu0 0
      %1124 = vmatpush1.bf16.msra.mxu0 0
      %1125 = vmatprep.subr.bf16.mxu0 0
      %1126 = vmatpush1.bf16.msra.mxu0 0
      %1127 = vmatprep.subr.bf16.mxu0 0
      %1128 = vmatpush1.bf16.msra.mxu0 0
      %1129 = vmatprep.subr.bf16.mxu0 0
      %1130 = vmatpush1.bf16.msra.mxu0 0
      %1131 = vmatprep.subr.bf16.mxu0 0
      %1132 = vmatpush1.bf16.msra.mxu0 0
      %1133 = vmatprep.subr.bf16.mxu0 0
      %1134 = vmatpush1.bf16.msra.mxu0 0
      %1135 = vmatprep.mubr.bf16.mxu0 0
      %1136 = vmatmul.mubr.bf16.gmra.mrb[0].mxu0 %v1099
      %v1137 = vpop.f32.mrb[0].mxu0
      %v1138 = vadd.f32 %v818, %v1137
      %v1139 = vpop.f32.mrb[0].mxu0
      %v1140 = vpop.f32.mrb[0].mxu0
      %v1141 = vadd.f32 %v818, %v1140
      %v1142 = vpop.f32.mrb[0].mxu0
      %1143 = vmatprep.mubr.bf16.mxu0 0
      %1144 = vmatmul.mubr.bf16.gmra.mrb[0].mxu0 %v1100
      %v1145 = vpop.f32.mrb[0].mxu0
      %v1146 = vadd.f32 %v818, %v1145
      %v1147 = vpop.f32.mrb[0].mxu0
      %v1148 = vpop.f32.mrb[0].mxu0
      %v1149 = vadd.f32 %v818, %v1148
      %v1150 = vpop.f32.mrb[0].mxu0
      %1151 = vmatprep.mubr.bf16.mxu0 0
      %1152 = vmatmul.mubr.bf16.gmra.mrb[0].mxu0 %v1101
      %v1153 = vpop.f32.mrb[0].mxu0
      %v1154 = vadd.f32 %v818, %v1153
      %v1155 = vpop.f32.mrb[0].mxu0
      %v1156 = vpop.f32.mrb[0].mxu0
      %v1157 = vadd.f32 %v818, %v1156
      %v1158 = vpop.f32.mrb[0].mxu0
      %1159 = vmatprep.mubr.bf16.mxu0 0
      %1160 = vmatmul.mubr.bf16.gmra.mrb[0].mxu0 %v1102
      %v1161 = vpop.f32.mrb[0].mxu0
      %v1162 = vadd.f32 %v818, %v1161
      %v1163 = vpop.f32.mrb[0].mxu0
      %v1164 = vpop.f32.mrb[0].mxu0
      %v1165 = vadd.f32 %v818, %v1164
      %v1166 = vpop.f32.mrb[0].mxu0
      %1167 = vdwg.mxu0
      %v1168 = vtanh.pop %v1138
      %v1169 = vtanh.pop %v1141
      %v1170 = vtanh.pop %v1146
      %v1171 = vtanh.pop %v1149
      %v1172 = vtanh.pop %v1154
      %v1173 = vtanh.pop %v1157
      %v1174 = vtanh.pop %v1162
      %v1175 = vtanh.pop %v1165
      %s1176 = scalar_lea.vmem %s3, 64
      %v1177 = vld [vmem:[%s1176] sm:$0xf]
      %v1178 = vld [vmem:[%s1176 + $0x4] sm:$0xf]
      %v1179 = vld [vmem:[%s1176 + $0x8] sm:$0xf]
      %v1180 = vld [vmem:[%s1176 + $0xc] sm:$0xf]
      %v1181 = vld [vmem:[%s1176 + $0x10] sm:$0xf]
      %v1182 = vld [vmem:[%s1176 + $0x14] sm:$0xf]
      %v1183 = vld [vmem:[%s1176 + $0x18] sm:$0xf]
      %v1184 = vld [vmem:[%s1176 + $0x1c] sm:$0xf]
      %v1185 = vld [vmem:[%s1176 + $0x20] sm:$0xf]
      %v1186 = vld [vmem:[%s1176 + $0x24] sm:$0xf]
      %v1187 = vld [vmem:[%s1176 + $0x28] sm:$0xf]
      %v1188 = vld [vmem:[%s1176 + $0x2c] sm:$0xf]
      %v1189 = vld [vmem:[%s1176 + $0x30] sm:$0xf]
      %v1190 = vld [vmem:[%s1176 + $0x34] sm:$0xf]
      %v1191 = vld [vmem:[%s1176 + $0x38] sm:$0xf]
      %v1192 = vld [vmem:[%s1176 + $0x3c] sm:$0xf]
      %s1193 = scalar_lea.vmem %s4, 1
      %v1194 = vld [vmem:[%s1193] sm:$0x1]
      %v1196 = vlaneseq
      %v1197 = vshrl.u32 %v1196, 7
      %v1198 = vsub.s32 0, %v1197
      %v1199 = vrot.slane %v1194, %v1198
      %v1201 = vpack.c.bf16 %v938, %v937
      %v1202 = vpack.c.bf16 %v940, %v939
      %v1203 = vpack.c.bf16 %v942, %v941
      %v1204 = vpack.c.bf16 %v944, %v943
      %v1221 = vunpack.c.l.b16 %v1177
      %v1222 = vunpack.c.l.b16 %v1178
      %v1223 = vunpack.c.l.b16 %v1179
      %v1224 = vunpack.c.l.b16 %v1180
      %v1225 = vunpack.c.l.b16 %v1181
      %v1226 = vunpack.c.l.b16 %v1182
      %v1227 = vunpack.c.l.b16 %v1183
      %v1228 = vunpack.c.l.b16 %v1184
      %v1229 = vunpack.c.l.b16 %v1185
      %v1230 = vunpack.c.l.b16 %v1186
      %v1231 = vunpack.c.l.b16 %v1187
      %v1232 = vunpack.c.l.b16 %v1188
      %v1233 = vunpack.c.l.b16 %v1189
      %v1234 = vunpack.c.l.b16 %v1190
      %v1235 = vunpack.c.l.b16 %v1191
      %v1236 = vunpack.c.l.b16 %v1192
      %v1237 = vpack.c.b16 %v1222, %v1221
      %v1238 = vpack.c.b16 %v1224, %v1223
      %v1239 = vpack.c.b16 %v1226, %v1225
      %v1240 = vpack.c.b16 %v1228, %v1227
      %v1241 = vpack.c.b16 %v1230, %v1229
      %v1242 = vpack.c.b16 %v1232, %v1231
      %v1243 = vpack.c.b16 %v1234, %v1233
      %v1244 = vpack.c.b16 %v1236, %v1235
      %1253 = vmatprep.subr.bf16.mxu0 0
      %1254 = vmatpush1.bf16.msra.mxu0 %v1237
      %1255 = vmatprep.subr.bf16.mxu0 0
      %1256 = vmatpush1.bf16.msra.mxu0 %v1238
      %1257 = vmatprep.subr.bf16.mxu0 0
      %1258 = vmatpush1.bf16.msra.mxu0 %v1239
      %1259 = vmatprep.subr.bf16.mxu0 0
      %1260 = vmatpush1.bf16.msra.mxu0 %v1240
      %1261 = vmatprep.subr.bf16.mxu0 0
      %1262 = vmatpush1.bf16.msra.mxu0 %v1241
      %1263 = vmatprep.subr.bf16.mxu0 0
      %1264 = vmatpush1.bf16.msra.mxu0 %v1242
      %1265 = vmatprep.subr.bf16.mxu0 0
      %1266 = vmatpush1.bf16.msra.mxu0 %v1243
      %1267 = vmatprep.subr.bf16.mxu0 0
      %1268 = vmatpush1.bf16.msra.mxu0 %v1244
      %1269 = vmatprep.subr.bf16.mxu0 0
      %1270 = vmatpush1.bf16.msra.mxu0 0
      %1271 = vmatprep.subr.bf16.mxu0 0
      %1272 = vmatpush1.bf16.msra.mxu0 0
      %1273 = vmatprep.subr.bf16.mxu0 0
      %1274 = vmatpush1.bf16.msra.mxu0 0
      %1275 = vmatprep.subr.bf16.mxu0 0
      %1276 = vmatpush1.bf16.msra.mxu0 0
      %1277 = vmatprep.subr.bf16.mxu0 0
      %1278 = vmatpush1.bf16.msra.mxu0 0
      %1279 = vmatprep.subr.bf16.mxu0 0
      %1280 = vmatpush1.bf16.msra.mxu0 0
      %1281 = vmatprep.subr.bf16.mxu0 0
      %1282 = vmatpush1.bf16.msra.mxu0 0
      %1283 = vmatprep.subr.bf16.mxu0 0
      %1284 = vmatpush1.bf16.msra.mxu0 0
      %1285 = vmatprep.mubr.bf16.mxu0 0
      %1286 = vmatmul.mubr.bf16.gmra.mrb[0].mxu0 %v1201
      %v1287 = vpop.f32.mrb[0].mxu0
      %v1288 = vadd.f32 %v1199, %v1287
      %v1289 = vpop.f32.mrb[0].mxu0
      %v1290 = vpop.f32.mrb[0].mxu0
      %v1291 = vadd.f32 %v1199, %v1290
      %v1292 = vpop.f32.mrb[0].mxu0
      %1293 = vmatprep.mubr.bf16.mxu0 0
      %1294 = vmatmul.mubr.bf16.gmra.mrb[0].mxu0 %v1202
      %v1295 = vpop.f32.mrb[0].mxu0
      %v1296 = vadd.f32 %v1199, %v1295
      %v1297 = vpop.f32.mrb[0].mxu0
      %v1298 = vpop.f32.mrb[0].mxu0
      %v1299 = vadd.f32 %v1199, %v1298
      %v1300 = vpop.f32.mrb[0].mxu0
      %1301 = vmatprep.mubr.bf16.mxu0 0
      %1302 = vmatmul.mubr.bf16.gmra.mrb[0].mxu0 %v1203
      %v1303 = vpop.f32.mrb[0].mxu0
      %v1304 = vadd.f32 %v1199, %v1303
      %v1305 = vpop.f32.mrb[0].mxu0
      %v1306 = vpop.f32.mrb[0].mxu0
      %v1307 = vadd.f32 %v1199, %v1306
      %v1308 = vpop.f32.mrb[0].mxu0
      %1309 = vmatprep.mubr.bf16.mxu0 0
      %1310 = vmatmul.mubr.bf16.gmra.mrb[0].mxu0 %v1204
      %v1311 = vpop.f32.mrb[0].mxu0
      %v1312 = vadd.f32 %v1199, %v1311
      %v1313 = vpop.f32.mrb[0].mxu0
      %v1314 = vpop.f32.mrb[0].mxu0
      %v1315 = vadd.f32 %v1199, %v1314
      %v1316 = vpop.f32.mrb[0].mxu0
      %1317 = vdwg.mxu0
      %v1318 = vtanh.pop %v1288
      %v1319 = vtanh.pop %v1291
      %v1320 = vtanh.pop %v1296
      %v1321 = vtanh.pop %v1299
      %v1322 = vtanh.pop %v1304
      %v1323 = vtanh.pop %v1307
      %v1324 = vtanh.pop %v1312
      %v1325 = vtanh.pop %v1315
      %v1326 = vpack.c.bf16 %v1015, %v1014
      %v1327 = vpack.c.bf16 %v1017, %v1016
      %v1328 = vpack.c.bf16 %v1019, %v1018
      %v1329 = vpack.c.bf16 %v1021, %v1020
      %1330 = vmatprep.subr.bf16.mxu0 0
      %1331 = vmatpush1.bf16.msra.mxu0 %v1237
      %1332 = vmatprep.subr.bf16.mxu0 0
      %1333 = vmatpush1.bf16.msra.mxu0 %v1238
      %1334 = vmatprep.subr.bf16.mxu0 0
      %1335 = vmatpush1.bf16.msra.mxu0 %v1239
      %1336 = vmatprep.subr.bf16.mxu0 0
      %1337 = vmatpush1.bf16.msra.mxu0 %v1240
      %1338 = vmatprep.subr.bf16.mxu0 0
      %1339 = vmatpush1.bf16.msra.mxu0 %v1241
      %1340 = vmatprep.subr.bf16.mxu0 0
      %1341 = vmatpush1.bf16.msra.mxu0 %v1242
      %1342 = vmatprep.subr.bf16.mxu0 0
      %1343 = vmatpush1.bf16.msra.mxu0 %v1243
      %1344 = vmatprep.subr.bf16.mxu0 0
      %1345 = vmatpush1.bf16.msra.mxu0 %v1244
      %1346 = vmatprep.subr.bf16.mxu0 0
      %1347 = vmatpush1.bf16.msra.mxu0 0
      %1348 = vmatprep.subr.bf16.mxu0 0
      %1349 = vmatpush1.bf16.msra.mxu0 0
      %1350 = vmatprep.subr.bf16.mxu0 0
      %1351 = vmatpush1.bf16.msra.mxu0 0
      %1352 = vmatprep.subr.bf16.mxu0 0
      %1353 = vmatpush1.bf16.msra.mxu0 0
      %1354 = vmatprep.subr.bf16.mxu0 0
      %1355 = vmatpush1.bf16.msra.mxu0 0
      %1356 = vmatprep.subr.bf16.mxu0 0
      %1357 = vmatpush1.bf16.msra.mxu0 0
      %1358 = vmatprep.subr.bf16.mxu0 0
      %1359 = vmatpush1.bf16.msra.mxu0 0
      %1360 = vmatprep.subr.bf16.mxu0 0
      %1361 = vmatpush1.bf16.msra.mxu0 0
      %1362 = vmatprep.mubr.bf16.mxu0 0
      %1363 = vmatmul.mubr.bf16.gmra.mrb[0].mxu0 %v1326
      %v1364 = vpop.f32.mrb[0].mxu0
      %v1365 = vadd.f32 %v1199, %v1364
      %v1366 = vpop.f32.mrb[0].mxu0
      %v1367 = vpop.f32.mrb[0].mxu0
      %v1368 = vadd.f32 %v1199, %v1367
      %v1369 = vpop.f32.mrb[0].mxu0
      %1370 = vmatprep.mubr.bf16.mxu0 0
      %1371 = vmatmul.mubr.bf16.gmra.mrb[0].mxu0 %v1327
      %v1372 = vpop.f32.mrb[0].mxu0
      %v1373 = vadd.f32 %v1199, %v1372
      %v1374 = vpop.f32.mrb[0].mxu0
      %v1375 = vpop.f32.mrb[0].mxu0
      %v1376 = vadd.f32 %v1199, %v1375
      %v1377 = vpop.f32.mrb[0].mxu0
      %1378 = vmatprep.mubr.bf16.mxu0 0
      %1379 = vmatmul.mubr.bf16.gmra.mrb[0].mxu0 %v1328
      %v1380 = vpop.f32.mrb[0].mxu0
      %v1381 = vadd.f32 %v1199, %v1380
      %v1382 = vpop.f32.mrb[0].mxu0
      %v1383 = vpop.f32.mrb[0].mxu0
      %v1384 = vadd.f32 %v1199, %v1383
      %v1385 = vpop.f32.mrb[0].mxu0
      %1386 = vmatprep.mubr.bf16.mxu0 0
      %1387 = vmatmul.mubr.bf16.gmra.mrb[0].mxu0 %v1329
      %v1388 = vpop.f32.mrb[0].mxu0
      %v1389 = vadd.f32 %v1199, %v1388
      %v1390 = vpop.f32.mrb[0].mxu0
      %v1391 = vpop.f32.mrb[0].mxu0
      %v1392 = vadd.f32 %v1199, %v1391
      %v1393 = vpop.f32.mrb[0].mxu0
      %1394 = vdwg.mxu0
      %v1395 = vtanh.pop %v1365
      %v1396 = vtanh.pop %v1368
      %v1397 = vtanh.pop %v1373
      %v1398 = vtanh.pop %v1376
      %v1399 = vtanh.pop %v1381
      %v1400 = vtanh.pop %v1384
      %v1401 = vtanh.pop %v1389
      %v1402 = vtanh.pop %v1392
      %v1403 = vpack.c.bf16 %v1092, %v1091
      %v1404 = vpack.c.bf16 %v1094, %v1093
      %v1405 = vpack.c.bf16 %v1096, %v1095
      %v1406 = vpack.c.bf16 %v1098, %v1097
      %1407 = vmatprep.subr.bf16.mxu0 0
      %1408 = vmatpush1.bf16.msra.mxu0 %v1237
      %1409 = vmatprep.subr.bf16.mxu0 0
      %1410 = vmatpush1.bf16.msra.mxu0 %v1238
      %1411 = vmatprep.subr.bf16.mxu0 0
      %1412 = vmatpush1.bf16.msra.mxu0 %v1239
      %1413 = vmatprep.subr.bf16.mxu0 0
      %1414 = vmatpush1.bf16.msra.mxu0 %v1240
      %1415 = vmatprep.subr.bf16.mxu0 0
      %1416 = vmatpush1.bf16.msra.mxu0 %v1241
      %1417 = vmatprep.subr.bf16.mxu0 0
      %1418 = vmatpush1.bf16.msra.mxu0 %v1242
      %1419 = vmatprep.subr.bf16.mxu0 0
      %1420 = vmatpush1.bf16.msra.mxu0 %v1243
      %1421 = vmatprep.subr.bf16.mxu0 0
      %1422 = vmatpush1.bf16.msra.mxu0 %v1244
      %1423 = vmatprep.subr.bf16.mxu0 0
      %1424 = vmatpush1.bf16.msra.mxu0 0
      %1425 = vmatprep.subr.bf16.mxu0 0
      %1426 = vmatpush1.bf16.msra.mxu0 0
      %1427 = vmatprep.subr.bf16.mxu0 0
      %1428 = vmatpush1.bf16.msra.mxu0 0
      %1429 = vmatprep.subr.bf16.mxu0 0
      %1430 = vmatpush1.bf16.msra.mxu0 0
      %1431 = vmatprep.subr.bf16.mxu0 0
      %1432 = vmatpush1.bf16.msra.mxu0 0
      %1433 = vmatprep.subr.bf16.mxu0 0
      %1434 = vmatpush1.bf16.msra.mxu0 0
      %1435 = vmatprep.subr.bf16.mxu0 0
      %1436 = vmatpush1.bf16.msra.mxu0 0
      %1437 = vmatprep.subr.bf16.mxu0 0
      %1438 = vmatpush1.bf16.msra.mxu0 0
      %1439 = vmatprep.mubr.bf16.mxu0 0
      %1440 = vmatmul.mubr.bf16.gmra.mrb[0].mxu0 %v1403
      %v1441 = vpop.f32.mrb[0].mxu0
      %v1442 = vadd.f32 %v1199, %v1441
      %v1443 = vpop.f32.mrb[0].mxu0
      %v1444 = vpop.f32.mrb[0].mxu0
      %v1445 = vadd.f32 %v1199, %v1444
      %v1446 = vpop.f32.mrb[0].mxu0
      %1447 = vmatprep.mubr.bf16.mxu0 0
      %1448 = vmatmul.mubr.bf16.gmra.mrb[0].mxu0 %v1404
      %v1449 = vpop.f32.mrb[0].mxu0
      %v1450 = vadd.f32 %v1199, %v1449
      %v1451 = vpop.f32.mrb[0].mxu0
      %v1452 = vpop.f32.mrb[0].mxu0
      %v1453 = vadd.f32 %v1199, %v1452
      %v1454 = vpop.f32.mrb[0].mxu0
      %1455 = vmatprep.mubr.bf16.mxu0 0
      %1456 = vmatmul.mubr.bf16.gmra.mrb[0].mxu0 %v1405
      %v1457 = vpop.f32.mrb[0].mxu0
      %v1458 = vadd.f32 %v1199, %v1457
      %v1459 = vpop.f32.mrb[0].mxu0
      %v1460 = vpop.f32.mrb[0].mxu0
      %v1461 = vadd.f32 %v1199, %v1460
      %v1462 = vpop.f32.mrb[0].mxu0
      %1463 = vmatprep.mubr.bf16.mxu0 0
      %1464 = vmatmul.mubr.bf16.gmra.mrb[0].mxu0 %v1406
      %v1465 = vpop.f32.mrb[0].mxu0
      %v1466 = vadd.f32 %v1199, %v1465
      %v1467 = vpop.f32.mrb[0].mxu0
      %v1468 = vpop.f32.mrb[0].mxu0
      %v1469 = vadd.f32 %v1199, %v1468
      %v1470 = vpop.f32.mrb[0].mxu0
      %1471 = vdwg.mxu0
      %v1472 = vtanh.pop %v1442
      %v1473 = vtanh.pop %v1445
      %v1474 = vtanh.pop %v1450
      %v1475 = vtanh.pop %v1453
      %v1476 = vtanh.pop %v1458
      %v1477 = vtanh.pop %v1461
      %v1478 = vtanh.pop %v1466
      %v1479 = vtanh.pop %v1469
      %v1480 = vpack.c.bf16 %v1169, %v1168
      %v1481 = vpack.c.bf16 %v1171, %v1170
      %v1482 = vpack.c.bf16 %v1173, %v1172
      %v1483 = vpack.c.bf16 %v1175, %v1174
      %1484 = vmatprep.subr.bf16.mxu0 0
      %1485 = vmatpush1.bf16.msra.mxu0 %v1237
      %1486 = vmatprep.subr.bf16.mxu0 0
      %1487 = vmatpush1.bf16.msra.mxu0 %v1238
      %1488 = vmatprep.subr.bf16.mxu0 0
      %1489 = vmatpush1.bf16.msra.mxu0 %v1239
      %1490 = vmatprep.subr.bf16.mxu0 0
      %1491 = vmatpush1.bf16.msra.mxu0 %v1240
      %1492 = vmatprep.subr.bf16.mxu0 0
      %1493 = vmatpush1.bf16.msra.mxu0 %v1241
      %1494 = vmatprep.subr.bf16.mxu0 0
      %1495 = vmatpush1.bf16.msra.mxu0 %v1242
      %1496 = vmatprep.subr.bf16.mxu0 0
      %1497 = vmatpush1.bf16.msra.mxu0 %v1243
      %1498 = vmatprep.subr.bf16.mxu0 0
      %1499 = vmatpush1.bf16.msra.mxu0 %v1244
      %1500 = vmatprep.subr.bf16.mxu0 0
      %1501 = vmatpush1.bf16.msra.mxu0 0
      %1502 = vmatprep.subr.bf16.mxu0 0
      %1503 = vmatpush1.bf16.msra.mxu0 0
      %1504 = vmatprep.subr.bf16.mxu0 0
      %1505 = vmatpush1.bf16.msra.mxu0 0
      %1506 = vmatprep.subr.bf16.mxu0 0
      %1507 = vmatpush1.bf16.msra.mxu0 0
      %1508 = vmatprep.subr.bf16.mxu0 0
      %1509 = vmatpush1.bf16.msra.mxu0 0
      %1510 = vmatprep.subr.bf16.mxu0 0
      %1511 = vmatpush1.bf16.msra.mxu0 0
      %1512 = vmatprep.subr.bf16.mxu0 0
      %1513 = vmatpush1.bf16.msra.mxu0 0
      %1514 = vmatprep.subr.bf16.mxu0 0
      %1515 = vmatpush1.bf16.msra.mxu0 0
      %1516 = vmatprep.mubr.bf16.mxu0 0
      %1517 = vmatmul.mubr.bf16.gmra.mrb[0].mxu0 %v1480
      %v1518 = vpop.f32.mrb[0].mxu0
      %v1519 = vadd.f32 %v1199, %v1518
      %v1520 = vpop.f32.mrb[0].mxu0
      %v1521 = vpop.f32.mrb[0].mxu0
      %v1522 = vadd.f32 %v1199, %v1521
      %v1523 = vpop.f32.mrb[0].mxu0
      %1524 = vmatprep.mubr.bf16.mxu0 0
      %1525 = vmatmul.mubr.bf16.gmra.mrb[0].mxu0 %v1481
      %v1526 = vpop.f32.mrb[0].mxu0
      %v1527 = vadd.f32 %v1199, %v1526
      %v1528 = vpop.f32.mrb[0].mxu0
      %v1529 = vpop.f32.mrb[0].mxu0
      %v1530 = vadd.f32 %v1199, %v1529
      %v1531 = vpop.f32.mrb[0].mxu0
      %1532 = vmatprep.mubr.bf16.mxu0 0
      %1533 = vmatmul.mubr.bf16.gmra.mrb[0].mxu0 %v1482
      %v1534 = vpop.f32.mrb[0].mxu0
      %v1535 = vadd.f32 %v1199, %v1534
      %v1536 = vpop.f32.mrb[0].mxu0
      %v1537 = vpop.f32.mrb[0].mxu0
      %v1538 = vadd.f32 %v1199, %v1537
      %v1539 = vpop.f32.mrb[0].mxu0
      %1540 = vmatprep.mubr.bf16.mxu0 0
      %1541 = vmatmul.mubr.bf16.gmra.mrb[0].mxu0 %v1483
      %v1542 = vpop.f32.mrb[0].mxu0
      %v1543 = vadd.f32 %v1199, %v1542
      %v1544 = vpop.f32.mrb[0].mxu0
      %v1545 = vpop.f32.mrb[0].mxu0
      %v1546 = vadd.f32 %v1199, %v1545
      %v1547 = vpop.f32.mrb[0].mxu0
      %1548 = vdwg.mxu0
      %v1549 = vtanh.pop %v1519
      %v1550 = vtanh.pop %v1522
      %v1551 = vtanh.pop %v1527
      %v1552 = vtanh.pop %v1530
      %v1553 = vtanh.pop %v1535
      %v1554 = vtanh.pop %v1538
      %v1555 = vtanh.pop %v1543
      %v1556 = vtanh.pop %v1546
      %v1557 = vpack.c.bf16 %v1319, %v1318
      %v1558 = vpack.c.bf16 %v1321, %v1320
      %v1559 = vpack.c.bf16 %v1323, %v1322
      %v1560 = vpack.c.bf16 %v1325, %v1324
      %v1577 = vunpack.c.l.b16 %v299
      %v1578 = vunpack.c.l.b16 %v300
      %v1579 = vunpack.c.l.b16 %v301
      %v1580 = vunpack.c.l.b16 %v302
      %v1581 = vunpack.c.l.b16 %v303
      %v1582 = vunpack.c.l.b16 %v304
      %v1583 = vunpack.c.l.b16 %v305
      %v1584 = vunpack.c.l.b16 %v306
      %v1585 = vunpack.c.l.b16 %v307
      %v1586 = vunpack.c.l.b16 %v308
      %v1587 = vunpack.c.l.b16 %v309
      %v1588 = vunpack.c.l.b16 %v310
      %v1589 = vunpack.c.l.b16 %v311
      %v1590 = vunpack.c.l.b16 %v312
      %v1591 = vunpack.c.l.b16 %v313
      %v1592 = vunpack.c.l.b16 %v314
      %v1593 = vpack.c.b16 %v1578, %v1577
      %v1594 = vpack.c.b16 %v1580, %v1579
      %v1595 = vpack.c.b16 %v1582, %v1581
      %v1596 = vpack.c.b16 %v1584, %v1583
      %v1597 = vpack.c.b16 %v1586, %v1585
      %v1598 = vpack.c.b16 %v1588, %v1587
      %v1599 = vpack.c.b16 %v1590, %v1589
      %v1600 = vpack.c.b16 %v1592, %v1591
      %1609 = vmatprep.subr.bf16.mxu0 0
      %1610 = vmatpush1.bf16.msra.mxu0 %v1593
      %1611 = vmatprep.subr.bf16.mxu0 0
      %1612 = vmatpush1.bf16.msra.mxu0 %v1594
      %1613 = vmatprep.subr.bf16.mxu0 0
      %1614 = vmatpush1.bf16.msra.mxu0 %v1595
      %1615 = vmatprep.subr.bf16.mxu0 0
      %1616 = vmatpush1.bf16.msra.mxu0 %v1596
      %1617 = vmatprep.subr.bf16.mxu0 0
      %1618 = vmatpush1.bf16.msra.mxu0 %v1597
      %1619 = vmatprep.subr.bf16.mxu0 0
      %1620 = vmatpush1.bf16.msra.mxu0 %v1598
      %1621 = vmatprep.subr.bf16.mxu0 0
      %1622 = vmatpush1.bf16.msra.mxu0 %v1599
      %1623 = vmatprep.subr.bf16.mxu0 0
      %1624 = vmatpush1.bf16.msra.mxu0 %v1600
      %1625 = vmatprep.subr.bf16.mxu0 0
      %1626 = vmatpush1.bf16.msra.mxu0 0
      %1627 = vmatprep.subr.bf16.mxu0 0
      %1628 = vmatpush1.bf16.msra.mxu0 0
      %1629 = vmatprep.subr.bf16.mxu0 0
      %1630 = vmatpush1.bf16.msra.mxu0 0
      %1631 = vmatprep.subr.bf16.mxu0 0
      %1632 = vmatpush1.bf16.msra.mxu0 0
      %1633 = vmatprep.subr.bf16.mxu0 0
      %1634 = vmatpush1.bf16.msra.mxu0 0
      %1635 = vmatprep.subr.bf16.mxu0 0
      %1636 = vmatpush1.bf16.msra.mxu0 0
      %1637 = vmatprep.subr.bf16.mxu0 0
      %1638 = vmatpush1.bf16.msra.mxu0 0
      %1639 = vmatprep.subr.bf16.mxu0 0
      %1640 = vmatpush1.bf16.msra.mxu0 0
      %1641 = vmatprep.mubr.bf16.mxu0 0
      %1642 = vmatmul.mubr.bf16.gmra.mrb[0].mxu0 %v1557
      %v1643 = vpop.f32.mrb[0].mxu0
      %v1644 = vadd.f32 %v327, %v1643
      %v1645 = vpop.f32.mrb[0].mxu0
      %v1646 = vpop.f32.mrb[0].mxu0
      %v1647 = vadd.f32 %v327, %v1646
      %v1648 = vpop.f32.mrb[0].mxu0
      %1649 = vmatprep.mubr.bf16.mxu0 0
      %1650 = vmatmul.mubr.bf16.gmra.mrb[0].mxu0 %v1558
      %v1651 = vpop.f32.mrb[0].mxu0
      %v1652 = vadd.f32 %v327, %v1651
      %v1653 = vpop.f32.mrb[0].mxu0
      %v1654 = vpop.f32.mrb[0].mxu0
      %v1655 = vadd.f32 %v327, %v1654
      %v1656 = vpop.f32.mrb[0].mxu0
      %1657 = vmatprep.mubr.bf16.mxu0 0
      %1658 = vmatmul.mubr.bf16.gmra.mrb[0].mxu0 %v1559
      %v1659 = vpop.f32.mrb[0].mxu0
      %v1660 = vadd.f32 %v327, %v1659
      %v1661 = vpop.f32.mrb[0].mxu0
      %v1662 = vpop.f32.mrb[0].mxu0
      %v1663 = vadd.f32 %v327, %v1662
      %v1664 = vpop.f32.mrb[0].mxu0
      %1665 = vmatprep.mubr.bf16.mxu0 0
      %1666 = vmatmul.mubr.bf16.gmra.mrb[0].mxu0 %v1560
      %v1667 = vpop.f32.mrb[0].mxu0
      %v1668 = vadd.f32 %v327, %v1667
      %v1669 = vpop.f32.mrb[0].mxu0
      %v1670 = vpop.f32.mrb[0].mxu0
      %v1671 = vadd.f32 %v327, %v1670
      %v1672 = vpop.f32.mrb[0].mxu0
      %1673 = vdwg.mxu0
      %1674 = vst [vmem:[%s280] sm:$0xff] %v1644
      %1675 = vst [vmem:[%s280 + $0x8] sm:$0xff] %v1647
      %1676 = vst [vmem:[%s280 + $0x10] sm:$0xff] %v1652
      %1677 = vst [vmem:[%s280 + $0x18] sm:$0xff] %v1655
      %1678 = vst [vmem:[%s280 + $0x20] sm:$0xff] %v1660
      %1679 = vst [vmem:[%s280 + $0x28] sm:$0xff] %v1663
      %1680 = vst [vmem:[%s280 + $0x30] sm:$0xff] %v1668
      %1681 = vst [vmem:[%s280 + $0x38] sm:$0xff] %v1671
      %v1682 = vpack.c.bf16 %v1396, %v1395
      %v1683 = vpack.c.bf16 %v1398, %v1397
      %v1684 = vpack.c.bf16 %v1400, %v1399
      %v1685 = vpack.c.bf16 %v1402, %v1401
      %1686 = vmatprep.subr.bf16.mxu0 0
      %1687 = vmatpush1.bf16.msra.mxu0 %v1593
      %1688 = vmatprep.subr.bf16.mxu0 0
      %1689 = vmatpush1.bf16.msra.mxu0 %v1594
      %1690 = vmatprep.subr.bf16.mxu0 0
      %1691 = vmatpush1.bf16.msra.mxu0 %v1595
      %1692 = vmatprep.subr.bf16.mxu0 0
      %1693 = vmatpush1.bf16.msra.mxu0 %v1596
      %1694 = vmatprep.subr.bf16.mxu0 0
      %1695 = vmatpush1.bf16.msra.mxu0 %v1597
      %1696 = vmatprep.subr.bf16.mxu0 0
      %1697 = vmatpush1.bf16.msra.mxu0 %v1598
      %1698 = vmatprep.subr.bf16.mxu0 0
      %1699 = vmatpush1.bf16.msra.mxu0 %v1599
      %1700 = vmatprep.subr.bf16.mxu0 0
      %1701 = vmatpush1.bf16.msra.mxu0 %v1600
      %1702 = vmatprep.subr.bf16.mxu0 0
      %1703 = vmatpush1.bf16.msra.mxu0 0
      %1704 = vmatprep.subr.bf16.mxu0 0
      %1705 = vmatpush1.bf16.msra.mxu0 0
      %1706 = vmatprep.subr.bf16.mxu0 0
      %1707 = vmatpush1.bf16.msra.mxu0 0
      %1708 = vmatprep.subr.bf16.mxu0 0
      %1709 = vmatpush1.bf16.msra.mxu0 0
      %1710 = vmatprep.subr.bf16.mxu0 0
      %1711 = vmatpush1.bf16.msra.mxu0 0
      %1712 = vmatprep.subr.bf16.mxu0 0
      %1713 = vmatpush1.bf16.msra.mxu0 0
      %1714 = vmatprep.subr.bf16.mxu0 0
      %1715 = vmatpush1.bf16.msra.mxu0 0
      %1716 = vmatprep.subr.bf16.mxu0 0
      %1717 = vmatpush1.bf16.msra.mxu0 0
      %1718 = vmatprep.mubr.bf16.mxu0 0
      %1719 = vmatmul.mubr.bf16.gmra.mrb[0].mxu0 %v1682
      %v1720 = vpop.f32.mrb[0].mxu0
      %v1721 = vadd.f32 %v327, %v1720
      %v1722 = vpop.f32.mrb[0].mxu0
      %v1723 = vpop.f32.mrb[0].mxu0
      %v1724 = vadd.f32 %v327, %v1723
      %v1725 = vpop.f32.mrb[0].mxu0
      %1726 = vmatprep.mubr.bf16.mxu0 0
      %1727 = vmatmul.mubr.bf16.gmra.mrb[0].mxu0 %v1683
      %v1728 = vpop.f32.mrb[0].mxu0
      %v1729 = vadd.f32 %v327, %v1728
      %v1730 = vpop.f32.mrb[0].mxu0
      %v1731 = vpop.f32.mrb[0].mxu0
      %v1732 = vadd.f32 %v327, %v1731
      %v1733 = vpop.f32.mrb[0].mxu0
      %1734 = vmatprep.mubr.bf16.mxu0 0
      %1735 = vmatmul.mubr.bf16.gmra.mrb[0].mxu0 %v1684
      %v1736 = vpop.f32.mrb[0].mxu0
      %v1737 = vadd.f32 %v327, %v1736
      %v1738 = vpop.f32.mrb[0].mxu0
      %v1739 = vpop.f32.mrb[0].mxu0
      %v1740 = vadd.f32 %v327, %v1739
      %v1741 = vpop.f32.mrb[0].mxu0
      %1742 = vmatprep.mubr.bf16.mxu0 0
      %1743 = vmatmul.mubr.bf16.gmra.mrb[0].mxu0 %v1685
      %v1744 = vpop.f32.mrb[0].mxu0
      %v1745 = vadd.f32 %v327, %v1744
      %v1746 = vpop.f32.mrb[0].mxu0
      %v1747 = vpop.f32.mrb[0].mxu0
      %v1748 = vadd.f32 %v327, %v1747
      %v1749 = vpop.f32.mrb[0].mxu0
      %1750 = vdwg.mxu0
      %1751 = vst [vmem:[%s280 + $0x40] sm:$0xff] %v1721
      %1752 = vst [vmem:[%s280 + $0x48] sm:$0xff] %v1724
      %1753 = vst [vmem:[%s280 + $0x50] sm:$0xff] %v1729
      %1754 = vst [vmem:[%s280 + $0x58] sm:$0xff] %v1732
      %1755 = vst [vmem:[%s280 + $0x60] sm:$0xff] %v1737
      %1756 = vst [vmem:[%s280 + $0x68] sm:$0xff] %v1740
      %1757 = vst [vmem:[%s280 + $0x70] sm:$0xff] %v1745
      %1758 = vst [vmem:[%s280 + $0x78] sm:$0xff] %v1748
      %v1759 = vpack.c.bf16 %v1473, %v1472
      %v1760 = vpack.c.bf16 %v1475, %v1474
      %v1761 = vpack.c.bf16 %v1477, %v1476
      %v1762 = vpack.c.bf16 %v1479, %v1478
      %1763 = vmatprep.subr.bf16.mxu0 0
      %1764 = vmatpush1.bf16.msra.mxu0 %v1593
      %1765 = vmatprep.subr.bf16.mxu0 0
      %1766 = vmatpush1.bf16.msra.mxu0 %v1594
      %1767 = vmatprep.subr.bf16.mxu0 0
      %1768 = vmatpush1.bf16.msra.mxu0 %v1595
      %1769 = vmatprep.subr.bf16.mxu0 0
      %1770 = vmatpush1.bf16.msra.mxu0 %v1596
      %1771 = vmatprep.subr.bf16.mxu0 0
      %1772 = vmatpush1.bf16.msra.mxu0 %v1597
      %1773 = vmatprep.subr.bf16.mxu0 0
      %1774 = vmatpush1.bf16.msra.mxu0 %v1598
      %1775 = vmatprep.subr.bf16.mxu0 0
      %1776 = vmatpush1.bf16.msra.mxu0 %v1599
      %1777 = vmatprep.subr.bf16.mxu0 0
      %1778 = vmatpush1.bf16.msra.mxu0 %v1600
      %1779 = vmatprep.subr.bf16.mxu0 0
      %1780 = vmatpush1.bf16.msra.mxu0 0
      %1781 = vmatprep.subr.bf16.mxu0 0
      %1782 = vmatpush1.bf16.msra.mxu0 0
      %1783 = vmatprep.subr.bf16.mxu0 0
      %1784 = vmatpush1.bf16.msra.mxu0 0
      %1785 = vmatprep.subr.bf16.mxu0 0
      %1786 = vmatpush1.bf16.msra.mxu0 0
      %1787 = vmatprep.subr.bf16.mxu0 0
      %1788 = vmatpush1.bf16.msra.mxu0 0
      %1789 = vmatprep.subr.bf16.mxu0 0
      %1790 = vmatpush1.bf16.msra.mxu0 0
      %1791 = vmatprep.subr.bf16.mxu0 0
      %1792 = vmatpush1.bf16.msra.mxu0 0
      %1793 = vmatprep.subr.bf16.mxu0 0
      %1794 = vmatpush1.bf16.msra.mxu0 0
      %1795 = vmatprep.mubr.bf16.mxu0 0
      %1796 = vmatmul.mubr.bf16.gmra.mrb[0].mxu0 %v1759
      %v1797 = vpop.f32.mrb[0].mxu0
      %v1798 = vadd.f32 %v327, %v1797
      %v1799 = vpop.f32.mrb[0].mxu0
      %v1800 = vpop.f32.mrb[0].mxu0
      %v1801 = vadd.f32 %v327, %v1800
      %v1802 = vpop.f32.mrb[0].mxu0
      %1803 = vmatprep.mubr.bf16.mxu0 0
      %1804 = vmatmul.mubr.bf16.gmra.mrb[0].mxu0 %v1760
      %v1805 = vpop.f32.mrb[0].mxu0
      %v1806 = vadd.f32 %v327, %v1805
      %v1807 = vpop.f32.mrb[0].mxu0
      %v1808 = vpop.f32.mrb[0].mxu0
      %v1809 = vadd.f32 %v327, %v1808
      %v1810 = vpop.f32.mrb[0].mxu0
      %1811 = vmatprep.mubr.bf16.mxu0 0
      %1812 = vmatmul.mubr.bf16.gmra.mrb[0].mxu0 %v1761
      %v1813 = vpop.f32.mrb[0].mxu0
      %v1814 = vadd.f32 %v327, %v1813
      %v1815 = vpop.f32.mrb[0].mxu0
      %v1816 = vpop.f32.mrb[0].mxu0
      %v1817 = vadd.f32 %v327, %v1816
      %v1818 = vpop.f32.mrb[0].mxu0
      %1819 = vmatprep.mubr.bf16.mxu0 0
      %1820 = vmatmul.mubr.bf16.gmra.mrb[0].mxu0 %v1762
      %v1821 = vpop.f32.mrb[0].mxu0
      %v1822 = vadd.f32 %v327, %v1821
      %v1823 = vpop.f32.mrb[0].mxu0
      %v1824 = vpop.f32.mrb[0].mxu0
      %v1825 = vadd.f32 %v327, %v1824
      %v1826 = vpop.f32.mrb[0].mxu0
      %1827 = vdwg.mxu0
      %1828 = vst [vmem:[%s280 + $0x80] sm:$0xff] %v1798
      %1829 = vst [vmem:[%s280 + $0x88] sm:$0xff] %v1801
      %1830 = vst [vmem:[%s280 + $0x90] sm:$0xff] %v1806
      %1831 = vst [vmem:[%s280 + $0x98] sm:$0xff] %v1809
      %1832 = vst [vmem:[%s280 + $0xa0] sm:$0xff] %v1814
      %1833 = vst [vmem:[%s280 + $0xa8] sm:$0xff] %v1817
      %1834 = vst [vmem:[%s280 + $0xb0] sm:$0xff] %v1822
      %1835 = vst [vmem:[%s280 + $0xb8] sm:$0xff] %v1825
      %v1836 = vpack.c.bf16 %v1550, %v1549
      %v1837 = vpack.c.bf16 %v1552, %v1551
      %v1838 = vpack.c.bf16 %v1554, %v1553
      %v1839 = vpack.c.bf16 %v1556, %v1555
      %1840 = vmatprep.subr.bf16.mxu0 0
      %1841 = vmatpush1.bf16.msra.mxu0 %v1593
      %1842 = vmatprep.subr.bf16.mxu0 0
      %1843 = vmatpush1.bf16.msra.mxu0 %v1594
      %1844 = vmatprep.subr.bf16.mxu0 0
      %1845 = vmatpush1.bf16.msra.mxu0 %v1595
      %1846 = vmatprep.subr.bf16.mxu0 0
      %1847 = vmatpush1.bf16.msra.mxu0 %v1596
      %1848 = vmatprep.subr.bf16.mxu0 0
      %1849 = vmatpush1.bf16.msra.mxu0 %v1597
      %1850 = vmatprep.subr.bf16.mxu0 0
      %1851 = vmatpush1.bf16.msra.mxu0 %v1598
      %1852 = vmatprep.subr.bf16.mxu0 0
      %1853 = vmatpush1.bf16.msra.mxu0 %v1599
      %1854 = vmatprep.subr.bf16.mxu0 0
      %1855 = vmatpush1.bf16.msra.mxu0 %v1600
      %1856 = vmatprep.subr.bf16.mxu0 0
      %1857 = vmatpush1.bf16.msra.mxu0 0
      %1858 = vmatprep.subr.bf16.mxu0 0
      %1859 = vmatpush1.bf16.msra.mxu0 0
      %1860 = vmatprep.subr.bf16.mxu0 0
      %1861 = vmatpush1.bf16.msra.mxu0 0
      %1862 = vmatprep.subr.bf16.mxu0 0
      %1863 = vmatpush1.bf16.msra.mxu0 0
      %1864 = vmatprep.subr.bf16.mxu0 0
      %1865 = vmatpush1.bf16.msra.mxu0 0
      %1866 = vmatprep.subr.bf16.mxu0 0
      %1867 = vmatpush1.bf16.msra.mxu0 0
      %1868 = vmatprep.subr.bf16.mxu0 0
      %1869 = vmatpush1.bf16.msra.mxu0 0
      %1870 = vmatprep.subr.bf16.mxu0 0
      %1871 = vmatpush1.bf16.msra.mxu0 0
      %1872 = vmatprep.mubr.bf16.mxu0 0
      %1873 = vmatmul.mubr.bf16.gmra.mrb[0].mxu0 %v1836
      %v1874 = vpop.f32.mrb[0].mxu0
      %v1875 = vadd.f32 %v327, %v1874
      %v1876 = vpop.f32.mrb[0].mxu0
      %v1877 = vpop.f32.mrb[0].mxu0
      %v1878 = vadd.f32 %v327, %v1877
      %v1879 = vpop.f32.mrb[0].mxu0
      %1880 = vmatprep.mubr.bf16.mxu0 0
      %1881 = vmatmul.mubr.bf16.gmra.mrb[0].mxu0 %v1837
      %v1882 = vpop.f32.mrb[0].mxu0
      %v1883 = vadd.f32 %v327, %v1882
      %v1884 = vpop.f32.mrb[0].mxu0
      %v1885 = vpop.f32.mrb[0].mxu0
      %v1886 = vadd.f32 %v327, %v1885
      %v1887 = vpop.f32.mrb[0].mxu0
      %1888 = vmatprep.mubr.bf16.mxu0 0
      %1889 = vmatmul.mubr.bf16.gmra.mrb[0].mxu0 %v1838
      %v1890 = vpop.f32.mrb[0].mxu0
      %v1891 = vadd.f32 %v327, %v1890
      %v1892 = vpop.f32.mrb[0].mxu0
      %v1893 = vpop.f32.mrb[0].mxu0
      %v1894 = vadd.f32 %v327, %v1893
      %v1895 = vpop.f32.mrb[0].mxu0
      %1896 = vmatprep.mubr.bf16.mxu0 0
      %1897 = vmatmul.mubr.bf16.gmra.mrb[0].mxu0 %v1839
      %v1898 = vpop.f32.mrb[0].mxu0
      %v1899 = vadd.f32 %v327, %v1898
      %v1900 = vpop.f32.mrb[0].mxu0
      %v1901 = vpop.f32.mrb[0].mxu0
      %v1902 = vadd.f32 %v327, %v1901
      %v1903 = vpop.f32.mrb[0].mxu0
      %1904 = vdwg.mxu0
      %1905 = vst [vmem:[%s280 + $0xc0] sm:$0xff] %v1875
      %1906 = vst [vmem:[%s280 + $0xc8] sm:$0xff] %v1878
      %1907 = vst [vmem:[%s280 + $0xd0] sm:$0xff] %v1883
      %1908 = vst [vmem:[%s280 + $0xd8] sm:$0xff] %v1886
      %1909 = vst [vmem:[%s280 + $0xe0] sm:$0xff] %v1891
      %1910 = vst [vmem:[%s280 + $0xe8] sm:$0xff] %v1894
      %1911 = vst [vmem:[%s280 + $0xf0] sm:$0xff] %v1899
      %1912 = vst [vmem:[%s280 + $0xf8] sm:$0xff] %v1902
      %s1913 = smul.u32 32, %s18
      %p1914 = scmp.lt.s32.totalorder %s1913, 63
      %s1915 = scalar_select %p1914, %s1913, 63
      %s1916 = smul.addr %s1915, 8
      %s1917 = scalar_lea.vmem %s7, %s1916
      // Predicated region
      $region49: #{net_forward.1} parent=47 // pred_check
        %p1918 = pneg %p188
      $region50: #{net_forward.1} parent=47 // pred_check_branch
        %1920 = sbr.rel (%p1918) target = $region52
      $region51: #{net_forward.1} parent=47 // pred_region
        %s1921 = smul.u32 32, %s18
      $region52: #{net_forward.1} parent=47 // pred_fallthru
        _
    $region48: #{net_forward.1} parent=5 // pred_fallthru
      _
    %p1922 = scmp.le.s32.totalorder 2, %s13
    // Predicated region
    $region53: #{net_forward.1} parent=5 // pred_check
      %p1923 = pneg %p1922
    $region54: #{net_forward.1} parent=5 // pred_check_branch
      %1925 = sbr.rel (%p1923) target = $region56
    $region55: #{net_forward.1} parent=5 // pred_region
      %s1926 = ssub.s32 %s13, 2
      // Predicated region
      $region57: #{net_forward.1} parent=55 // pred_check
        %p1927 = pneg %p194
      $region58: #{net_forward.1} parent=55 // pred_check_branch
        %1929 = sbr.rel (%p1927) target = $region60
      $region59: #{net_forward.1} parent=55 // pred_region
        %s1930 = smul.u32 32, %s19
        %p1931 = scmp.lt.s32.totalorder %s1930, 63
        %s1932 = scalar_select %p1931, %s1930, 63
        %s1933 = smul.addr %s1932, 8
        %s1934 = scalar_lea.vmem %s7, %s1933
      $region60: #{net_forward.1} parent=55 // pred_fallthru
        _
    $region56: #{net_forward.1} parent=5 // pred_fallthru
      _
  $region6: #{net_forward.1} parent=0 // loop_footer
    %s17 = sadd.s32 1, %s13
  $region7: #{net_forward.1} parent=0 // loop_footer_branch
    %12 = sbr.rel target = $region3
  $region8: #{net_forward.1} parent=0 // loop_exit
    _

</llo_original>
